<compile_context>
chip_gen: v7x
topology: tpu7x:2x2x1
jax: 0.10.0
libtpu: 0.0.40
codegen_flags: <defaults>
</compile_context>

<pallas_src>
import functools

import jax
import jax.numpy as jnp
from jax.experimental import pallas as pl
from jax.experimental.pallas import tpu as pltpu  # noqa: F401 (kept for TPU-specific tuning hooks)


def _hetero_gcn_fused_kernel(adj_ref, invdeg_ref, x_ref, w1_ref, b1_ref,
                             w2_ref, b2_ref, o_ref, *, n_rel: int):
    # Right-normalized adjacency, all relations concatenated along K: [N, R*N].
    # (inv_deg scaling kept in-kernel so per-relation normalization is exact.)
    a_tilde = jnp.concatenate(
        [adj_ref[r] * invdeg_ref[r] for r in range(n_rel)], axis=1)

    x = x_ref[...]                                            # [N, F_in]

    # ---- layer 1: h = ReLU( A_tilde @ [X @ W1_r]_r + sum_r b1_r ) ----
    xw = jnp.concatenate(
        [jnp.dot(x, w1_ref[r], preferred_element_type=jnp.float32)
         for r in range(n_rel)], axis=0)                      # [R*N, H]
    h = jnp.dot(a_tilde, xw, preferred_element_type=jnp.float32) + b1_ref[...]
    h = jnp.maximum(h, 0.0)

    # ---- layer 2: logits = A_tilde @ [h @ W2_r]_r + sum_r b2_r ----
    hw = jnp.concatenate(
        [jnp.dot(h, w2_ref[r], preferred_element_type=jnp.float32)
         for r in range(n_rel)], axis=0)                      # [R*N, C]
    out = jnp.dot(a_tilde, hw, preferred_element_type=jnp.float32) + b2_ref[...]
    o_ref[...] = out.astype(o_ref.dtype)


def hetero_gcn_forward(adj, inv_deg, x, w1, b1, w2, b2):
    """adj: [R,N,N], inv_deg: [R,N,1], x: [N,F_in],
    w1: [R,F_in,H], b1: [R,H], w2: [R,H,C], b2: [R,C]  ->  [N, C]."""
    R, N, _ = adj.shape
    C = w2.shape[2]

    # HeteroGraphConv(aggregate='sum') sums every relation's bias contribution.
    b1_sum = jnp.sum(b1, axis=0, keepdims=True)               # [1, H]
    b2_sum = jnp.sum(b2, axis=0, keepdims=True)               # [1, C]

    kernel = functools.partial(_hetero_gcn_fused_kernel, n_rel=R)

    # No grid: all operands stay resident in VMEM for the single kernel call.
    # TODO(synk): if N grows well beyond toy size, add a "parallel" grid axis
    # over destination-row tiles (dimension_semantics=("parallel",)) and cap
    # the adjacency tile per-generation VMEM (v7x: 64 MiB physical).
    return pl.pallas_call(
        kernel,
        out_shape=jax.ShapeDtypeStruct((N, C), jnp.float32),
    )(adj, inv_deg, x, w1, b1_sum, w2, b2_sum)


def _build_params_and_graph():
    # Small synthetic shapes consistent with the module.
    N = 128           # number of 'review' nodes
    in_feats = 32     # FraudYelp feature dim stand-in
    hidden_feats = 16
    num_classes = 2
    R = 3             # FraudYelp edge types: net_rsr, net_rtr, net_rur

    key = jax.random.PRNGKey(0)
    k_mask, k_wt, k_x, k_w1, k_b1, k_w2, k_b2 = jax.random.split(key, 7)

    # Dense weighted adjacency per relation: A[r, v, u] = weight of edge u->v.
    mask = (jax.random.uniform(k_mask, (R, N, N)) < 0.1).astype(jnp.float32)
    edge_wt = jax.random.uniform(k_wt, (R, N, N), minval=0.1, maxval=1.0)
    adj = mask * edge_wt

    # norm='right': unweighted in-degree, clamped to min 1.
    deg = jnp.maximum(jnp.sum(mask, axis=-1), 1.0)             # [R, N]
    inv_deg = (1.0 / deg)[:, :, None].astype(jnp.float32)      # [R, N, 1]

    x = jax.random.normal(k_x, (N, in_feats), dtype=jnp.float32)

    # Deterministic parameter init (xavier-like weights, small biases).
    def xavier(k, shape):
        fan_in, fan_out = shape[-2], shape[-1]
        limit = (6.0 / (fan_in + fan_out)) ** 0.5
        return jax.random.uniform(k, shape, minval=-limit, maxval=limit,
                                  dtype=jnp.float32)

    w1 = xavier(k_w1, (R, in_feats, hidden_feats))
    b1 = 0.1 * jax.random.normal(k_b1, (R, hidden_feats), dtype=jnp.float32)
    w2 = xavier(k_w2, (R, hidden_feats, num_classes))
    b2 = 0.1 * jax.random.normal(k_b2, (R, num_classes), dtype=jnp.float32)

    return adj, inv_deg, x, w1, b1, w2, b2


def _ref_forward(adj, inv_deg, x, w1, b1, w2, b2):
    """Pure-JAX reference of the same dense-graph math."""
    def layer(h, w, b, relu):
        y = jnp.zeros((h.shape[0], w.shape[2]), dtype=jnp.float32)
        for r in range(adj.shape[0]):
            y = y + inv_deg[r] * (adj[r] @ (h @ w[r])) + b[r]
        return jnp.maximum(y, 0.0) if relu else y

    return layer(layer(x, w1, b1, True), w2, b2, False)


if __name__ == "__main__":
    adj, inv_deg, x, w1, b1, w2, b2 = _build_params_and_graph()

    out = hetero_gcn_forward(adj, inv_deg, x, w1, b1, w2, b2)
    out = jax.block_until_ready(out)

    ref = _ref_forward(adj, inv_deg, x, w1, b1, w2, b2)

    assert out.shape == (x.shape[0], w2.shape[2])
    assert jnp.allclose(out, ref, atol=1e-3, rtol=1e-3), (
        float(jnp.max(jnp.abs(out - ref))))

    print("KERNEL_OK")
</pallas_src>

<mosaic_0001>
module attributes {stable_mosaic.version = 11 : i64} {
  func.func @_hetero_gcn_fused_kernel(%arg0: memref<3x128x128xf32, #tpu.memory_space<vmem>>, %arg1: memref<3x128x1xf32, #tpu.memory_space<vmem>>, %arg2: memref<128x32xf32, #tpu.memory_space<vmem>>, %arg3: memref<3x32x16xf32, #tpu.memory_space<vmem>>, %arg4: memref<1x16xf32, #tpu.memory_space<vmem>>, %arg5: memref<3x16x2xf32, #tpu.memory_space<vmem>>, %arg6: memref<1x2xf32, #tpu.memory_space<vmem>>, %arg7: memref<128x2xf32, #tpu.memory_space<vmem>>) attributes {dimension_semantics = [], scalar_prefetch = 0 : i64, scratch_operands = 0 : i64, tpu.core_type = #tpu.core_type<tc>} {
    %c0 = arith.constant 0 : index
    %c0_0 = arith.constant 0 : index
    %c0_1 = arith.constant 0 : index
    %0 = vector.load %arg0[%c0, %c0_0, %c0_1] : memref<3x128x128xf32, #tpu.memory_space<vmem>>, vector<1x128x128xf32>
    %1 = vector.shape_cast %0 : vector<1x128x128xf32> to vector<128x128xf32>
    %c0_2 = arith.constant 0 : index
    %c0_3 = arith.constant 0 : index
    %c0_4 = arith.constant 0 : index
    %2 = vector.load %arg1[%c0_2, %c0_3, %c0_4] : memref<3x128x1xf32, #tpu.memory_space<vmem>>, vector<1x128x1xf32>
    %3 = vector.shape_cast %2 : vector<1x128x1xf32> to vector<128x1xf32>
    %4 = vector.broadcast %3 : vector<128x1xf32> to vector<128x128xf32>
    %5 = arith.mulf %1, %4 : vector<128x128xf32>
    %c1 = arith.constant 1 : index
    %c0_5 = arith.constant 0 : index
    %c0_6 = arith.constant 0 : index
    %6 = vector.load %arg0[%c1, %c0_5, %c0_6] : memref<3x128x128xf32, #tpu.memory_space<vmem>>, vector<1x128x128xf32>
    %7 = vector.shape_cast %6 : vector<1x128x128xf32> to vector<128x128xf32>
    %c1_7 = arith.constant 1 : index
    %c0_8 = arith.constant 0 : index
    %c0_9 = arith.constant 0 : index
    %8 = vector.load %arg1[%c1_7, %c0_8, %c0_9] : memref<3x128x1xf32, #tpu.memory_space<vmem>>, vector<1x128x1xf32>
    %9 = vector.shape_cast %8 : vector<1x128x1xf32> to vector<128x1xf32>
    %10 = vector.broadcast %9 : vector<128x1xf32> to vector<128x128xf32>
    %11 = arith.mulf %7, %10 : vector<128x128xf32>
    %c2 = arith.constant 2 : index
    %c0_10 = arith.constant 0 : index
    %c0_11 = arith.constant 0 : index
    %12 = vector.load %arg0[%c2, %c0_10, %c0_11] : memref<3x128x128xf32, #tpu.memory_space<vmem>>, vector<1x128x128xf32>
    %13 = vector.shape_cast %12 : vector<1x128x128xf32> to vector<128x128xf32>
    %c2_12 = arith.constant 2 : index
    %c0_13 = arith.constant 0 : index
    %c0_14 = arith.constant 0 : index
    %14 = vector.load %arg1[%c2_12, %c0_13, %c0_14] : memref<3x128x1xf32, #tpu.memory_space<vmem>>, vector<1x128x1xf32>
    %15 = vector.shape_cast %14 : vector<1x128x1xf32> to vector<128x1xf32>
    %16 = vector.broadcast %15 : vector<128x1xf32> to vector<128x128xf32>
    %17 = arith.mulf %13, %16 : vector<128x128xf32>
    %18 = tpu.concatenate %5, %11, %17 in 1 : vector<128x128xf32>, vector<128x128xf32>, vector<128x128xf32> -> vector<128x384xf32>
    %c0_15 = arith.constant 0 : index
    %c0_16 = arith.constant 0 : index
    %19 = vector.load %arg2[%c0_15, %c0_16] : memref<128x32xf32, #tpu.memory_space<vmem>>, vector<128x32xf32>
    %c0_17 = arith.constant 0 : index
    %c0_18 = arith.constant 0 : index
    %c0_19 = arith.constant 0 : index
    %20 = vector.load %arg3[%c0_17, %c0_18, %c0_19] : memref<3x32x16xf32, #tpu.memory_space<vmem>>, vector<1x32x16xf32>
    %21 = vector.shape_cast %20 : vector<1x32x16xf32> to vector<32x16xf32>
    %cst = arith.constant dense<0.000000e+00> : vector<128x16xf32>
    %22 = tpu.matmul %19, %21, %cst {dimension_numbers = #tpu.dot_dimension_numbers<[1], [0], [0], [1], [0, 0, 1, 1], [], []>} : vector<128x32xf32>, vector<32x16xf32>, vector<128x16xf32> -> vector<128x16xf32>
    %c1_20 = arith.constant 1 : index
    %c0_21 = arith.constant 0 : index
    %c0_22 = arith.constant 0 : index
    %23 = vector.load %arg3[%c1_20, %c0_21, %c0_22] : memref<3x32x16xf32, #tpu.memory_space<vmem>>, vector<1x32x16xf32>
    %24 = vector.shape_cast %23 : vector<1x32x16xf32> to vector<32x16xf32>
    %cst_23 = arith.constant dense<0.000000e+00> : vector<128x16xf32>
    %25 = tpu.matmul %19, %24, %cst_23 {dimension_numbers = #tpu.dot_dimension_numbers<[1], [0], [0], [1], [0, 0, 1, 1], [], []>} : vector<128x32xf32>, vector<32x16xf32>, vector<128x16xf32> -> vector<128x16xf32>
    %c2_24 = arith.constant 2 : index
    %c0_25 = arith.constant 0 : index
    %c0_26 = arith.constant 0 : index
    %26 = vector.load %arg3[%c2_24, %c0_25, %c0_26] : memref<3x32x16xf32, #tpu.memory_space<vmem>>, vector<1x32x16xf32>
    %27 = vector.shape_cast %26 : vector<1x32x16xf32> to vector<32x16xf32>
    %cst_27 = arith.constant dense<0.000000e+00> : vector<128x16xf32>
    %28 = tpu.matmul %19, %27, %cst_27 {dimension_numbers = #tpu.dot_dimension_numbers<[1], [0], [0], [1], [0, 0, 1, 1], [], []>} : vector<128x32xf32>, vector<32x16xf32>, vector<128x16xf32> -> vector<128x16xf32>
    %29 = tpu.concatenate %22, %25, %28 in 0 : vector<128x16xf32>, vector<128x16xf32>, vector<128x16xf32> -> vector<384x16xf32>
    %cst_28 = arith.constant dense<0.000000e+00> : vector<128x16xf32>
    %30 = tpu.matmul %18, %29, %cst_28 {dimension_numbers = #tpu.dot_dimension_numbers<[1], [0], [0], [1], [0, 0, 1, 1], [], []>} : vector<128x384xf32>, vector<384x16xf32>, vector<128x16xf32> -> vector<128x16xf32>
    %c0_29 = arith.constant 0 : index
    %c0_30 = arith.constant 0 : index
    %31 = vector.load %arg4[%c0_29, %c0_30] : memref<1x16xf32, #tpu.memory_space<vmem>>, vector<1x16xf32>
    %32 = vector.broadcast %31 : vector<1x16xf32> to vector<128x16xf32>
    %33 = arith.addf %30, %32 : vector<128x16xf32>
    %cst_31 = arith.constant 0.000000e+00 : f32
    %34 = vector.broadcast %cst_31 : f32 to vector<128x16xf32>
    %35 = arith.maximumf %33, %34 : vector<128x16xf32>
    %c0_32 = arith.constant 0 : index
    %c0_33 = arith.constant 0 : index
    %c0_34 = arith.constant 0 : index
    %36 = vector.load %arg5[%c0_32, %c0_33, %c0_34] : memref<3x16x2xf32, #tpu.memory_space<vmem>>, vector<1x16x2xf32>
    %37 = vector.shape_cast %36 : vector<1x16x2xf32> to vector<16x2xf32>
    %cst_35 = arith.constant dense<0.000000e+00> : vector<128x2xf32>
    %38 = tpu.matmul %35, %37, %cst_35 {dimension_numbers = #tpu.dot_dimension_numbers<[1], [0], [0], [1], [0, 0, 1, 1], [], []>} : vector<128x16xf32>, vector<16x2xf32>, vector<128x2xf32> -> vector<128x2xf32>
    %c1_36 = arith.constant 1 : index
    %c0_37 = arith.constant 0 : index
    %c0_38 = arith.constant 0 : index
    %39 = vector.load %arg5[%c1_36, %c0_37, %c0_38] : memref<3x16x2xf32, #tpu.memory_space<vmem>>, vector<1x16x2xf32>
    %40 = vector.shape_cast %39 : vector<1x16x2xf32> to vector<16x2xf32>
    %cst_39 = arith.constant dense<0.000000e+00> : vector<128x2xf32>
    %41 = tpu.matmul %35, %40, %cst_39 {dimension_numbers = #tpu.dot_dimension_numbers<[1], [0], [0], [1], [0, 0, 1, 1], [], []>} : vector<128x16xf32>, vector<16x2xf32>, vector<128x2xf32> -> vector<128x2xf32>
    %c2_40 = arith.constant 2 : index
    %c0_41 = arith.constant 0 : index
    %c0_42 = arith.constant 0 : index
    %42 = vector.load %arg5[%c2_40, %c0_41, %c0_42] : memref<3x16x2xf32, #tpu.memory_space<vmem>>, vector<1x16x2xf32>
    %43 = vector.shape_cast %42 : vector<1x16x2xf32> to vector<16x2xf32>
    %cst_43 = arith.constant dense<0.000000e+00> : vector<128x2xf32>
    %44 = tpu.matmul %35, %43, %cst_43 {dimension_numbers = #tpu.dot_dimension_numbers<[1], [0], [0], [1], [0, 0, 1, 1], [], []>} : vector<128x16xf32>, vector<16x2xf32>, vector<128x2xf32> -> vector<128x2xf32>
    %45 = tpu.concatenate %38, %41, %44 in 0 : vector<128x2xf32>, vector<128x2xf32>, vector<128x2xf32> -> vector<384x2xf32>
    %cst_44 = arith.constant dense<0.000000e+00> : vector<128x2xf32>
    %46 = tpu.matmul %18, %45, %cst_44 {dimension_numbers = #tpu.dot_dimension_numbers<[1], [0], [0], [1], [0, 0, 1, 1], [], []>} : vector<128x384xf32>, vector<384x2xf32>, vector<128x2xf32> -> vector<128x2xf32>
    %c0_45 = arith.constant 0 : index
    %c0_46 = arith.constant 0 : index
    %47 = vector.load %arg6[%c0_45, %c0_46] : memref<1x2xf32, #tpu.memory_space<vmem>>, vector<1x2xf32>
    %48 = vector.broadcast %47 : vector<1x2xf32> to vector<128x2xf32>
    %49 = arith.addf %46, %48 : vector<128x2xf32>
    %c0_47 = arith.constant 0 : index
    %c0_48 = arith.constant 0 : index
    %50 = vector.load %arg7[%c0_47, %c0_48] : memref<128x2xf32, #tpu.memory_space<vmem>>, vector<128x2xf32>
    tpu.vector_store %arg7[%c0_47, %c0_48], %49 {strides = array<i32>} : memref<128x2xf32, #tpu.memory_space<vmem>>, vector<128x2xf32>,
    return
  }
}

</mosaic_0001>

<llo_original>
// kernel: tpu_custom_call.1
$region0: #{tpu_custom_call.1}
  #allocation0 [shape = 'u32[]', space=smem, size = 0x4, offset = 0x4, fixed_abs, tag = 'smem constant byte address 0x4 - core index']
  #allocation1 [shape = 'u32[144,128]{1,0:T(1,128)}', space=vmem, size = 0x12000, scoped, tag = 'internal scratch']
  %s0 = inlined_call_operand.vmem [shape: f32[3,128,128], index: 0, kind: input, shape index: {}]
  %s1 = inlined_call_operand.vmem [shape: f32[3,128,1], index: 1, kind: input, shape index: {}]
  %s2 = inlined_call_operand.vmem [shape: f32[128,32], index: 2, kind: input, shape index: {}]
  %s3 = inlined_call_operand.vmem [shape: f32[3,32,16], index: 3, kind: input, shape index: {}]
  %s4 = inlined_call_operand.vmem [shape: f32[1,16], index: 4, kind: input, shape index: {}]
  %s5 = inlined_call_operand.vmem [shape: f32[3,16,2], index: 5, kind: input, shape index: {}]
  %s6 = inlined_call_operand.vmem [shape: f32[1,2], index: 6, kind: input, shape index: {}]
  %s7 = inlined_call_operand.vmem [shape: f32[128,2], index: 7, kind: output, shape index: {}]
  %s8 = sld [smem:[#allocation0]]
  $region38: #{tpu_custom_call.1} parent=0
    _
  %s10 = ssub.s32 1, %s8
  %s11 = scalar_select 0, %s10, %s8
  // Predicated region
  $region2: #{tpu_custom_call.1} parent=0 // pred_check
    _
  $region3: #{tpu_custom_call.1} parent=0 // pred_check_branch
    %13 = sbr.rel (0) target = $region5
  $region4: #{tpu_custom_call.1} parent=0 // pred_region
    _
  $region5: #{tpu_custom_call.1} parent=0 // pred_fallthru
    _
  // Predicated region
  $region6: #{tpu_custom_call.1} parent=0 // pred_check
    _
  $region7: #{tpu_custom_call.1} parent=0 // pred_check_branch
    %15 = sbr.rel (0) target = $region9
  $region8: #{tpu_custom_call.1} parent=0 // pred_region
    _
  $region9: #{tpu_custom_call.1} parent=0 // pred_fallthru
    _
  // Predicated region
  $region10: #{tpu_custom_call.1} parent=0 // pred_check
    _
  $region11: #{tpu_custom_call.1} parent=0 // pred_check_branch
    %17 = sbr.rel (0) target = $region13
  $region12: #{tpu_custom_call.1} parent=0 // pred_region
    _
  $region13: #{tpu_custom_call.1} parent=0 // pred_fallthru
    _
  // Predicated region
  $region14: #{tpu_custom_call.1} parent=0 // pred_check
    _
  $region15: #{tpu_custom_call.1} parent=0 // pred_check_branch
    %19 = sbr.rel (0) target = $region17
  $region16: #{tpu_custom_call.1} parent=0 // pred_region
    _
  $region17: #{tpu_custom_call.1} parent=0 // pred_fallthru
    _
  // Predicated region
  $region18: #{tpu_custom_call.1} parent=0 // pred_check
    _
  $region19: #{tpu_custom_call.1} parent=0 // pred_check_branch
    %21 = sbr.rel (0) target = $region21
  $region20: #{tpu_custom_call.1} parent=0 // pred_region
    _
  $region21: #{tpu_custom_call.1} parent=0 // pred_fallthru
    _
  // Predicated region
  $region22: #{tpu_custom_call.1} parent=0 // pred_check
    _
  $region23: #{tpu_custom_call.1} parent=0 // pred_check_branch
    %23 = sbr.rel (0) target = $region25
  $region24: #{tpu_custom_call.1} parent=0 // pred_region
    _
  $region25: #{tpu_custom_call.1} parent=0 // pred_fallthru
    _
  // Predicated region
  $region26: #{tpu_custom_call.1} parent=0 // pred_check
    _
  $region27: #{tpu_custom_call.1} parent=0 // pred_check_branch
    %25 = sbr.rel (0) target = $region29
  $region28: #{tpu_custom_call.1} parent=0 // pred_region
    _
  $region29: #{tpu_custom_call.1} parent=0 // pred_fallthru
    _
  %v26 = vld [vmem:[%s0] sm:$0xff]
  %v27 = vld [vmem:[%s0 + $0x8] sm:$0xff]
  %v28 = vld [vmem:[%s0 + $0x10] sm:$0xff]
  %v29 = vld [vmem:[%s0 + $0x18] sm:$0xff]
  %v30 = vld [vmem:[%s0 + $0x20] sm:$0xff]
  %v31 = vld [vmem:[%s0 + $0x28] sm:$0xff]
  %v32 = vld [vmem:[%s0 + $0x30] sm:$0xff]
  %v33 = vld [vmem:[%s0 + $0x38] sm:$0xff]
  %v34 = vld [vmem:[%s0 + $0x40] sm:$0xff]
  %v35 = vld [vmem:[%s0 + $0x48] sm:$0xff]
  %v36 = vld [vmem:[%s0 + $0x50] sm:$0xff]
  %v37 = vld [vmem:[%s0 + $0x58] sm:$0xff]
  %v38 = vld [vmem:[%s0 + $0x60] sm:$0xff]
  %v39 = vld [vmem:[%s0 + $0x68] sm:$0xff]
  %v40 = vld [vmem:[%s0 + $0x70] sm:$0xff]
  %v41 = vld [vmem:[%s0 + $0x78] sm:$0xff]
  %v42 = vld [vmem:[%s1] sm:$0xff]
  %v43 = vld [vmem:[%s1 + $0x8] sm:$0xff]
  %v44 = vld [vmem:[%s1 + $0x10] sm:$0xff]
  %v45 = vld [vmem:[%s1 + $0x18] sm:$0xff]
  %v46 = vld [vmem:[%s1 + $0x20] sm:$0xff]
  %v47 = vld [vmem:[%s1 + $0x28] sm:$0xff]
  %v48 = vld [vmem:[%s1 + $0x30] sm:$0xff]
  %v49 = vld [vmem:[%s1 + $0x38] sm:$0xff]
  %v50 = vld [vmem:[%s1 + $0x40] sm:$0xff]
  %v51 = vld [vmem:[%s1 + $0x48] sm:$0xff]
  %v52 = vld [vmem:[%s1 + $0x50] sm:$0xff]
  %v53 = vld [vmem:[%s1 + $0x58] sm:$0xff]
  %v54 = vld [vmem:[%s1 + $0x60] sm:$0xff]
  %v55 = vld [vmem:[%s1 + $0x68] sm:$0xff]
  %v56 = vld [vmem:[%s1 + $0x70] sm:$0xff]
  %v57 = vld [vmem:[%s1 + $0x78] sm:$0xff]
  %59 = vset.pattern.permute.xlu0 0
  %60 = vperm.xlu0 %59, %v42
  %v61 = vpop.permute.xlu0 %60
  %64 = vset.pattern.permute.xlu0 0
  %65 = vperm.xlu0 %64, %v43
  %v66 = vpop.permute.xlu0 %65
  %69 = vset.pattern.permute.xlu0 0
  %70 = vperm.xlu0 %69, %v44
  %v71 = vpop.permute.xlu0 %70
  %74 = vset.pattern.permute.xlu0 0
  %75 = vperm.xlu0 %74, %v45
  %v76 = vpop.permute.xlu0 %75
  %79 = vset.pattern.permute.xlu0 0
  %80 = vperm.xlu0 %79, %v46
  %v81 = vpop.permute.xlu0 %80
  %84 = vset.pattern.permute.xlu0 0
  %85 = vperm.xlu0 %84, %v47
  %v86 = vpop.permute.xlu0 %85
  %89 = vset.pattern.permute.xlu0 0
  %90 = vperm.xlu0 %89, %v48
  %v91 = vpop.permute.xlu0 %90
  %94 = vset.pattern.permute.xlu0 0
  %95 = vperm.xlu0 %94, %v49
  %v96 = vpop.permute.xlu0 %95
  %99 = vset.pattern.permute.xlu0 0
  %100 = vperm.xlu0 %99, %v50
  %v101 = vpop.permute.xlu0 %100
  %104 = vset.pattern.permute.xlu0 0
  %105 = vperm.xlu0 %104, %v51
  %v106 = vpop.permute.xlu0 %105
  %109 = vset.pattern.permute.xlu0 0
  %110 = vperm.xlu0 %109, %v52
  %v111 = vpop.permute.xlu0 %110
  %114 = vset.pattern.permute.xlu0 0
  %115 = vperm.xlu0 %114, %v53
  %v116 = vpop.permute.xlu0 %115
  %119 = vset.pattern.permute.xlu0 0
  %120 = vperm.xlu0 %119, %v54
  %v121 = vpop.permute.xlu0 %120
  %124 = vset.pattern.permute.xlu0 0
  %125 = vperm.xlu0 %124, %v55
  %v126 = vpop.permute.xlu0 %125
  %129 = vset.pattern.permute.xlu0 0
  %130 = vperm.xlu0 %129, %v56
  %v131 = vpop.permute.xlu0 %130
  %134 = vset.pattern.permute.xlu0 0
  %135 = vperm.xlu0 %134, %v57
  %v136 = vpop.permute.xlu0 %135
  %v138 = vmul.f32 %v26, %v61
  %v139 = vmul.f32 %v27, %v66
  %v140 = vmul.f32 %v28, %v71
  %v141 = vmul.f32 %v29, %v76
  %v142 = vmul.f32 %v30, %v81
  %v143 = vmul.f32 %v31, %v86
  %v144 = vmul.f32 %v32, %v91
  %v145 = vmul.f32 %v33, %v96
  %v146 = vmul.f32 %v34, %v101
  %v147 = vmul.f32 %v35, %v106
  %v148 = vmul.f32 %v36, %v111
  %v149 = vmul.f32 %v37, %v116
  %v150 = vmul.f32 %v38, %v121
  %v151 = vmul.f32 %v39, %v126
  %v152 = vmul.f32 %v40, %v131
  %v153 = vmul.f32 %v41, %v136
  %s154 = scalar_lea.vmem %s0, 128
  %v155 = vld [vmem:[%s154] sm:$0xff]
  %v156 = vld [vmem:[%s154 + $0x8] sm:$0xff]
  %v157 = vld [vmem:[%s154 + $0x10] sm:$0xff]
  %v158 = vld [vmem:[%s154 + $0x18] sm:$0xff]
  %v159 = vld [vmem:[%s154 + $0x20] sm:$0xff]
  %v160 = vld [vmem:[%s154 + $0x28] sm:$0xff]
  %v161 = vld [vmem:[%s154 + $0x30] sm:$0xff]
  %v162 = vld [vmem:[%s154 + $0x38] sm:$0xff]
  %v163 = vld [vmem:[%s154 + $0x40] sm:$0xff]
  %v164 = vld [vmem:[%s154 + $0x48] sm:$0xff]
  %v165 = vld [vmem:[%s154 + $0x50] sm:$0xff]
  %v166 = vld [vmem:[%s154 + $0x58] sm:$0xff]
  %v167 = vld [vmem:[%s154 + $0x60] sm:$0xff]
  %v168 = vld [vmem:[%s154 + $0x68] sm:$0xff]
  %v169 = vld [vmem:[%s154 + $0x70] sm:$0xff]
  %v170 = vld [vmem:[%s154 + $0x78] sm:$0xff]
  %s171 = scalar_lea.vmem %s1, 128
  %v172 = vld [vmem:[%s171] sm:$0xff]
  %v173 = vld [vmem:[%s171 + $0x8] sm:$0xff]
  %v174 = vld [vmem:[%s171 + $0x10] sm:$0xff]
  %v175 = vld [vmem:[%s171 + $0x18] sm:$0xff]
  %v176 = vld [vmem:[%s171 + $0x20] sm:$0xff]
  %v177 = vld [vmem:[%s171 + $0x28] sm:$0xff]
  %v178 = vld [vmem:[%s171 + $0x30] sm:$0xff]
  %v179 = vld [vmem:[%s171 + $0x38] sm:$0xff]
  %v180 = vld [vmem:[%s171 + $0x40] sm:$0xff]
  %v181 = vld [vmem:[%s171 + $0x48] sm:$0xff]
  %v182 = vld [vmem:[%s171 + $0x50] sm:$0xff]
  %v183 = vld [vmem:[%s171 + $0x58] sm:$0xff]
  %v184 = vld [vmem:[%s171 + $0x60] sm:$0xff]
  %v185 = vld [vmem:[%s171 + $0x68] sm:$0xff]
  %v186 = vld [vmem:[%s171 + $0x70] sm:$0xff]
  %v187 = vld [vmem:[%s171 + $0x78] sm:$0xff]
  %189 = vset.pattern.permute.xlu0 0
  %190 = vperm.xlu0 %189, %v172
  %v191 = vpop.permute.xlu0 %190
  %194 = vset.pattern.permute.xlu0 0
  %195 = vperm.xlu0 %194, %v173
  %v196 = vpop.permute.xlu0 %195
  %199 = vset.pattern.permute.xlu0 0
  %200 = vperm.xlu0 %199, %v174
  %v201 = vpop.permute.xlu0 %200
  %204 = vset.pattern.permute.xlu0 0
  %205 = vperm.xlu0 %204, %v175
  %v206 = vpop.permute.xlu0 %205
  %209 = vset.pattern.permute.xlu0 0
  %210 = vperm.xlu0 %209, %v176
  %v211 = vpop.permute.xlu0 %210
  %214 = vset.pattern.permute.xlu0 0
  %215 = vperm.xlu0 %214, %v177
  %v216 = vpop.permute.xlu0 %215
  %219 = vset.pattern.permute.xlu0 0
  %220 = vperm.xlu0 %219, %v178
  %v221 = vpop.permute.xlu0 %220
  %224 = vset.pattern.permute.xlu0 0
  %225 = vperm.xlu0 %224, %v179
  %v226 = vpop.permute.xlu0 %225
  %229 = vset.pattern.permute.xlu0 0
  %230 = vperm.xlu0 %229, %v180
  %v231 = vpop.permute.xlu0 %230
  %234 = vset.pattern.permute.xlu0 0
  %235 = vperm.xlu0 %234, %v181
  %v236 = vpop.permute.xlu0 %235
  %239 = vset.pattern.permute.xlu0 0
  %240 = vperm.xlu0 %239, %v182
  %v241 = vpop.permute.xlu0 %240
  %244 = vset.pattern.permute.xlu0 0
  %245 = vperm.xlu0 %244, %v183
  %v246 = vpop.permute.xlu0 %245
  %249 = vset.pattern.permute.xlu0 0
  %250 = vperm.xlu0 %249, %v184
  %v251 = vpop.permute.xlu0 %250
  %254 = vset.pattern.permute.xlu0 0
  %255 = vperm.xlu0 %254, %v185
  %v256 = vpop.permute.xlu0 %255
  %259 = vset.pattern.permute.xlu0 0
  %260 = vperm.xlu0 %259, %v186
  %v261 = vpop.permute.xlu0 %260
  %264 = vset.pattern.permute.xlu0 0
  %265 = vperm.xlu0 %264, %v187
  %v266 = vpop.permute.xlu0 %265
  %v268 = vmul.f32 %v155, %v191
  %v269 = vmul.f32 %v156, %v196
  %v270 = vmul.f32 %v157, %v201
  %v271 = vmul.f32 %v158, %v206
  %v272 = vmul.f32 %v159, %v211
  %v273 = vmul.f32 %v160, %v216
  %v274 = vmul.f32 %v161, %v221
  %v275 = vmul.f32 %v162, %v226
  %v276 = vmul.f32 %v163, %v231
  %v277 = vmul.f32 %v164, %v236
  %v278 = vmul.f32 %v165, %v241
  %v279 = vmul.f32 %v166, %v246
  %v280 = vmul.f32 %v167, %v251
  %v281 = vmul.f32 %v168, %v256
  %v282 = vmul.f32 %v169, %v261
  %v283 = vmul.f32 %v170, %v266
  %s284 = scalar_lea.vmem %s0, 256
  %v285 = vld [vmem:[%s284] sm:$0xff]
  %v286 = vld [vmem:[%s284 + $0x8] sm:$0xff]
  %v287 = vld [vmem:[%s284 + $0x10] sm:$0xff]
  %v288 = vld [vmem:[%s284 + $0x18] sm:$0xff]
  %v289 = vld [vmem:[%s284 + $0x20] sm:$0xff]
  %v290 = vld [vmem:[%s284 + $0x28] sm:$0xff]
  %v291 = vld [vmem:[%s284 + $0x30] sm:$0xff]
  %v292 = vld [vmem:[%s284 + $0x38] sm:$0xff]
  %v293 = vld [vmem:[%s284 + $0x40] sm:$0xff]
  %v294 = vld [vmem:[%s284 + $0x48] sm:$0xff]
  %v295 = vld [vmem:[%s284 + $0x50] sm:$0xff]
  %v296 = vld [vmem:[%s284 + $0x58] sm:$0xff]
  %v297 = vld [vmem:[%s284 + $0x60] sm:$0xff]
  %v298 = vld [vmem:[%s284 + $0x68] sm:$0xff]
  %v299 = vld [vmem:[%s284 + $0x70] sm:$0xff]
  %v300 = vld [vmem:[%s284 + $0x78] sm:$0xff]
  %s301 = scalar_lea.vmem %s1, 256
  %v302 = vld [vmem:[%s301] sm:$0xff]
  %v303 = vld [vmem:[%s301 + $0x8] sm:$0xff]
  %v304 = vld [vmem:[%s301 + $0x10] sm:$0xff]
  %v305 = vld [vmem:[%s301 + $0x18] sm:$0xff]
  %v306 = vld [vmem:[%s301 + $0x20] sm:$0xff]
  %v307 = vld [vmem:[%s301 + $0x28] sm:$0xff]
  %v308 = vld [vmem:[%s301 + $0x30] sm:$0xff]
  %v309 = vld [vmem:[%s301 + $0x38] sm:$0xff]
  %v310 = vld [vmem:[%s301 + $0x40] sm:$0xff]
  %v311 = vld [vmem:[%s301 + $0x48] sm:$0xff]
  %v312 = vld [vmem:[%s301 + $0x50] sm:$0xff]
  %v313 = vld [vmem:[%s301 + $0x58] sm:$0xff]
  %v314 = vld [vmem:[%s301 + $0x60] sm:$0xff]
  %v315 = vld [vmem:[%s301 + $0x68] sm:$0xff]
  %v316 = vld [vmem:[%s301 + $0x70] sm:$0xff]
  %v317 = vld [vmem:[%s301 + $0x78] sm:$0xff]
  %319 = vset.pattern.permute.xlu0 0
  %320 = vperm.xlu0 %319, %v302
  %v321 = vpop.permute.xlu0 %320
  %324 = vset.pattern.permute.xlu0 0
  %325 = vperm.xlu0 %324, %v303
  %v326 = vpop.permute.xlu0 %325
  %329 = vset.pattern.permute.xlu0 0
  %330 = vperm.xlu0 %329, %v304
  %v331 = vpop.permute.xlu0 %330
  %334 = vset.pattern.permute.xlu0 0
  %335 = vperm.xlu0 %334, %v305
  %v336 = vpop.permute.xlu0 %335
  %339 = vset.pattern.permute.xlu0 0
  %340 = vperm.xlu0 %339, %v306
  %v341 = vpop.permute.xlu0 %340
  %344 = vset.pattern.permute.xlu0 0
  %345 = vperm.xlu0 %344, %v307
  %v346 = vpop.permute.xlu0 %345
  %349 = vset.pattern.permute.xlu0 0
  %350 = vperm.xlu0 %349, %v308
  %v351 = vpop.permute.xlu0 %350
  %354 = vset.pattern.permute.xlu0 0
  %355 = vperm.xlu0 %354, %v309
  %v356 = vpop.permute.xlu0 %355
  %359 = vset.pattern.permute.xlu0 0
  %360 = vperm.xlu0 %359, %v310
  %v361 = vpop.permute.xlu0 %360
  %364 = vset.pattern.permute.xlu0 0
  %365 = vperm.xlu0 %364, %v311
  %v366 = vpop.permute.xlu0 %365
  %369 = vset.pattern.permute.xlu0 0
  %370 = vperm.xlu0 %369, %v312
  %v371 = vpop.permute.xlu0 %370
  %374 = vset.pattern.permute.xlu0 0
  %375 = vperm.xlu0 %374, %v313
  %v376 = vpop.permute.xlu0 %375
  %379 = vset.pattern.permute.xlu0 0
  %380 = vperm.xlu0 %379, %v314
  %v381 = vpop.permute.xlu0 %380
  %384 = vset.pattern.permute.xlu0 0
  %385 = vperm.xlu0 %384, %v315
  %v386 = vpop.permute.xlu0 %385
  %389 = vset.pattern.permute.xlu0 0
  %390 = vperm.xlu0 %389, %v316
  %v391 = vpop.permute.xlu0 %390
  %394 = vset.pattern.permute.xlu0 0
  %395 = vperm.xlu0 %394, %v317
  %v396 = vpop.permute.xlu0 %395
  %v398 = vmul.f32 %v285, %v321
  %v399 = vmul.f32 %v286, %v326
  %v400 = vmul.f32 %v287, %v331
  %v401 = vmul.f32 %v288, %v336
  %v402 = vmul.f32 %v289, %v341
  %v403 = vmul.f32 %v290, %v346
  %v404 = vmul.f32 %v291, %v351
  %v405 = vmul.f32 %v292, %v356
  %v406 = vmul.f32 %v293, %v361
  %v407 = vmul.f32 %v294, %v366
  %v408 = vmul.f32 %v295, %v371
  %v409 = vmul.f32 %v296, %v376
  %v410 = vmul.f32 %v297, %v381
  %v411 = vmul.f32 %v298, %v386
  %v412 = vmul.f32 %v299, %v391
  %v413 = vmul.f32 %v300, %v396
  %v414 = vld [vmem:[%s2] sm:$0xff]
  %v415 = vld [vmem:[%s2 + $0x8] sm:$0xff]
  %v416 = vld [vmem:[%s2 + $0x10] sm:$0xff]
  %v417 = vld [vmem:[%s2 + $0x18] sm:$0xff]
  %v418 = vld [vmem:[%s2 + $0x20] sm:$0xff]
  %v419 = vld [vmem:[%s2 + $0x28] sm:$0xff]
  %v420 = vld [vmem:[%s2 + $0x30] sm:$0xff]
  %v421 = vld [vmem:[%s2 + $0x38] sm:$0xff]
  %v422 = vld [vmem:[%s2 + $0x40] sm:$0xff]
  %v423 = vld [vmem:[%s2 + $0x48] sm:$0xff]
  %v424 = vld [vmem:[%s2 + $0x50] sm:$0xff]
  %v425 = vld [vmem:[%s2 + $0x58] sm:$0xff]
  %v426 = vld [vmem:[%s2 + $0x60] sm:$0xff]
  %v427 = vld [vmem:[%s2 + $0x68] sm:$0xff]
  %v428 = vld [vmem:[%s2 + $0x70] sm:$0xff]
  %v429 = vld [vmem:[%s2 + $0x78] sm:$0xff]
  %v430 = vld [vmem:[%s3] sm:$0xff]
  %v431 = vld [vmem:[%s3 + $0x8] sm:$0xff]
  %v432 = vld [vmem:[%s3 + $0x10] sm:$0xff]
  %v433 = vld [vmem:[%s3 + $0x18] sm:$0xff]
  %vm434 = vcmask 261120
  %v436 = vsel %vm434, %v414, 0
  %v439 = vsel %vm434, %v415, 0
  %v442 = vsel %vm434, %v416, 0
  %v445 = vsel %vm434, %v417, 0
  %v448 = vsel %vm434, %v418, 0
  %v451 = vsel %vm434, %v419, 0
  %v454 = vsel %vm434, %v420, 0
  %v457 = vsel %vm434, %v421, 0
  %v460 = vsel %vm434, %v422, 0
  %v463 = vsel %vm434, %v423, 0
  %v466 = vsel %vm434, %v424, 0
  %v469 = vsel %vm434, %v425, 0
  %v472 = vsel %vm434, %v426, 0
  %v475 = vsel %vm434, %v427, 0
  %v478 = vsel %vm434, %v428, 0
  %v481 = vsel %vm434, %v429, 0
  %483 = vmatprep.subr.mxu0 0.0
  %484 = vmatpush1.msra.mxu0 %v430
  %485 = vmatprep.subr.mxu0 0.0
  %486 = vmatpush1.msra.mxu0 %v431
  %487 = vmatprep.subr.mxu0 0.0
  %488 = vmatpush1.msra.mxu0 %v432
  %489 = vmatprep.subr.mxu0 0.0
  %490 = vmatpush1.msra.mxu0 %v433
  %491 = vmatprep.subr.mxu0 0.0
  %492 = vmatpush1.msra.mxu0 0.0
  %493 = vmatprep.subr.mxu0 0.0
  %494 = vmatpush1.msra.mxu0 0.0
  %495 = vmatprep.subr.mxu0 0.0
  %496 = vmatpush1.msra.mxu0 0.0
  %497 = vmatprep.subr.mxu0 0.0
  %498 = vmatpush1.msra.mxu0 0.0
  %499 = vmatprep.subr.mxu0 0.0
  %500 = vmatpush1.msra.mxu0 0.0
  %501 = vmatprep.subr.mxu0 0.0
  %502 = vmatpush1.msra.mxu0 0.0
  %503 = vmatprep.subr.mxu0 0.0
  %504 = vmatpush1.msra.mxu0 0.0
  %505 = vmatprep.subr.mxu0 0.0
  %506 = vmatpush1.msra.mxu0 0.0
  %507 = vmatprep.subr.mxu0 0.0
  %508 = vmatpush1.msra.mxu0 0.0
  %509 = vmatprep.subr.mxu0 0.0
  %510 = vmatpush1.msra.mxu0 0.0
  %511 = vmatprep.subr.mxu0 0.0
  %512 = vmatpush1.msra.mxu0 0.0
  %513 = vmatprep.subr.mxu0 0.0
  %514 = vmatpush1.msra.mxu0 0.0
  %515 = vmatprep.subr.mxu0 0.0
  %516 = vmatpush1.msra.mxu0 0.0
  %517 = vmatprep.subr.mxu0 0.0
  %518 = vmatpush1.msra.mxu0 0.0
  %519 = vmatprep.subr.mxu0 0.0
  %520 = vmatpush1.msra.mxu0 0.0
  %521 = vmatprep.subr.mxu0 0.0
  %522 = vmatpush1.msra.mxu0 0.0
  %523 = vmatprep.subr.mxu0 0.0
  %524 = vmatpush1.msra.mxu0 0.0
  %525 = vmatprep.subr.mxu0 0.0
  %526 = vmatpush1.msra.mxu0 0.0
  %527 = vmatprep.subr.mxu0 0.0
  %528 = vmatpush1.msra.mxu0 0.0
  %529 = vmatprep.subr.mxu0 0.0
  %530 = vmatpush1.msra.mxu0 0.0
  %531 = vmatprep.subr.mxu0 0.0
  %532 = vmatpush1.msra.mxu0 0.0
  %533 = vmatprep.subr.mxu0 0.0
  %534 = vmatpush1.msra.mxu0 0.0
  %535 = vmatprep.subr.mxu0 0.0
  %536 = vmatpush1.msra.mxu0 0.0
  %537 = vmatprep.subr.mxu0 0.0
  %538 = vmatpush1.msra.mxu0 0.0
  %539 = vmatprep.subr.mxu0 0.0
  %540 = vmatpush1.msra.mxu0 0.0
  %541 = vmatprep.subr.mxu0 0.0
  %542 = vmatpush1.msra.mxu0 0.0
  %543 = vmatprep.subr.mxu0 0.0
  %544 = vmatpush1.msra.mxu0 0.0
  %545 = vmatprep.subr.mxu0 0.0
  %546 = vmatpush1.msra.mxu0 0.0
  %547 = vmatprep.mubr.f32.mxu0 0.0
  %548 = vmatmul.mubr.f32.gmra.mrb[0].mxu0 %v436
  %v549 = vpop.f32.mrb[0].mxu0
  %v550 = vadd.f32 0.0, %v549
  %v551 = vpop.f32.mrb[0].mxu0
  %552 = vmatprep.mubr.f32.mxu0 0.0
  %553 = vmatmul.mubr.f32.gmra.mrb[0].mxu0 %v439
  %v554 = vpop.f32.mrb[0].mxu0
  %v555 = vadd.f32 0.0, %v554
  %v556 = vpop.f32.mrb[0].mxu0
  %557 = vmatprep.mubr.f32.mxu0 0.0
  %558 = vmatmul.mubr.f32.gmra.mrb[0].mxu0 %v442
  %v559 = vpop.f32.mrb[0].mxu0
  %v560 = vadd.f32 0.0, %v559
  %v561 = vpop.f32.mrb[0].mxu0
  %562 = vmatprep.mubr.f32.mxu0 0.0
  %563 = vmatmul.mubr.f32.gmra.mrb[0].mxu0 %v445
  %v564 = vpop.f32.mrb[0].mxu0
  %v565 = vadd.f32 0.0, %v564
  %v566 = vpop.f32.mrb[0].mxu0
  %567 = vmatprep.mubr.f32.mxu0 0.0
  %568 = vmatmul.mubr.f32.gmra.mrb[0].mxu0 %v448
  %v569 = vpop.f32.mrb[0].mxu0
  %v570 = vadd.f32 0.0, %v569
  %v571 = vpop.f32.mrb[0].mxu0
  %572 = vmatprep.mubr.f32.mxu0 0.0
  %573 = vmatmul.mubr.f32.gmra.mrb[0].mxu0 %v451
  %v574 = vpop.f32.mrb[0].mxu0
  %v575 = vadd.f32 0.0, %v574
  %v576 = vpop.f32.mrb[0].mxu0
  %577 = vmatprep.mubr.f32.mxu0 0.0
  %578 = vmatmul.mubr.f32.gmra.mrb[0].mxu0 %v454
  %v579 = vpop.f32.mrb[0].mxu0
  %v580 = vadd.f32 0.0, %v579
  %v581 = vpop.f32.mrb[0].mxu0
  %582 = vmatprep.mubr.f32.mxu0 0.0
  %583 = vmatmul.mubr.f32.gmra.mrb[0].mxu0 %v457
  %v584 = vpop.f32.mrb[0].mxu0
  %v585 = vadd.f32 0.0, %v584
  %v586 = vpop.f32.mrb[0].mxu0
  %587 = vmatprep.mubr.f32.mxu0 0.0
  %588 = vmatmul.mubr.f32.gmra.mrb[0].mxu0 %v460
  %v589 = vpop.f32.mrb[0].mxu0
  %v590 = vadd.f32 0.0, %v589
  %v591 = vpop.f32.mrb[0].mxu0
  %592 = vmatprep.mubr.f32.mxu0 0.0
  %593 = vmatmul.mubr.f32.gmra.mrb[0].mxu0 %v463
  %v594 = vpop.f32.mrb[0].mxu0
  %v595 = vadd.f32 0.0, %v594
  %v596 = vpop.f32.mrb[0].mxu0
  %597 = vmatprep.mubr.f32.mxu0 0.0
  %598 = vmatmul.mubr.f32.gmra.mrb[0].mxu0 %v466
  %v599 = vpop.f32.mrb[0].mxu0
  %v600 = vadd.f32 0.0, %v599
  %v601 = vpop.f32.mrb[0].mxu0
  %602 = vmatprep.mubr.f32.mxu0 0.0
  %603 = vmatmul.mubr.f32.gmra.mrb[0].mxu0 %v469
  %v604 = vpop.f32.mrb[0].mxu0
  %v605 = vadd.f32 0.0, %v604
  %v606 = vpop.f32.mrb[0].mxu0
  %607 = vmatprep.mubr.f32.mxu0 0.0
  %608 = vmatmul.mubr.f32.gmra.mrb[0].mxu0 %v472
  %v609 = vpop.f32.mrb[0].mxu0
  %v610 = vadd.f32 0.0, %v609
  %v611 = vpop.f32.mrb[0].mxu0
  %612 = vmatprep.mubr.f32.mxu0 0.0
  %613 = vmatmul.mubr.f32.gmra.mrb[0].mxu0 %v475
  %v614 = vpop.f32.mrb[0].mxu0
  %v615 = vadd.f32 0.0, %v614
  %v616 = vpop.f32.mrb[0].mxu0
  %617 = vmatprep.mubr.f32.mxu0 0.0
  %618 = vmatmul.mubr.f32.gmra.mrb[0].mxu0 %v478
  %v619 = vpop.f32.mrb[0].mxu0
  %v620 = vadd.f32 0.0, %v619
  %v621 = vpop.f32.mrb[0].mxu0
  %622 = vmatprep.mubr.f32.mxu0 0.0
  %623 = vmatmul.mubr.f32.gmra.mrb[0].mxu0 %v481
  %v624 = vpop.f32.mrb[0].mxu0
  %v625 = vadd.f32 0.0, %v624
  %v626 = vpop.f32.mrb[0].mxu0
  %627 = vdwg.mxu0
  %s628 = scalar_lea.vmem %s3, 32
  %v629 = vld [vmem:[%s628] sm:$0xff]
  %v630 = vld [vmem:[%s628 + $0x8] sm:$0xff]
  %v631 = vld [vmem:[%s628 + $0x10] sm:$0xff]
  %v632 = vld [vmem:[%s628 + $0x18] sm:$0xff]
  %633 = vmatprep.subr.mxu0 0.0
  %634 = vmatpush1.msra.mxu0 %v629
  %635 = vmatprep.subr.mxu0 0.0
  %636 = vmatpush1.msra.mxu0 %v630
  %637 = vmatprep.subr.mxu0 0.0
  %638 = vmatpush1.msra.mxu0 %v631
  %639 = vmatprep.subr.mxu0 0.0
  %640 = vmatpush1.msra.mxu0 %v632
  %641 = vmatprep.subr.mxu0 0.0
  %642 = vmatpush1.msra.mxu0 0.0
  %643 = vmatprep.subr.mxu0 0.0
  %644 = vmatpush1.msra.mxu0 0.0
  %645 = vmatprep.subr.mxu0 0.0
  %646 = vmatpush1.msra.mxu0 0.0
  %647 = vmatprep.subr.mxu0 0.0
  %648 = vmatpush1.msra.mxu0 0.0
  %649 = vmatprep.subr.mxu0 0.0
  %650 = vmatpush1.msra.mxu0 0.0
  %651 = vmatprep.subr.mxu0 0.0
  %652 = vmatpush1.msra.mxu0 0.0
  %653 = vmatprep.subr.mxu0 0.0
  %654 = vmatpush1.msra.mxu0 0.0
  %655 = vmatprep.subr.mxu0 0.0
  %656 = vmatpush1.msra.mxu0 0.0
  %657 = vmatprep.subr.mxu0 0.0
  %658 = vmatpush1.msra.mxu0 0.0
  %659 = vmatprep.subr.mxu0 0.0
  %660 = vmatpush1.msra.mxu0 0.0
  %661 = vmatprep.subr.mxu0 0.0
  %662 = vmatpush1.msra.mxu0 0.0
  %663 = vmatprep.subr.mxu0 0.0
  %664 = vmatpush1.msra.mxu0 0.0
  %665 = vmatprep.subr.mxu0 0.0
  %666 = vmatpush1.msra.mxu0 0.0
  %667 = vmatprep.subr.mxu0 0.0
  %668 = vmatpush1.msra.mxu0 0.0
  %669 = vmatprep.subr.mxu0 0.0
  %670 = vmatpush1.msra.mxu0 0.0
  %671 = vmatprep.subr.mxu0 0.0
  %672 = vmatpush1.msra.mxu0 0.0
  %673 = vmatprep.subr.mxu0 0.0
  %674 = vmatpush1.msra.mxu0 0.0
  %675 = vmatprep.subr.mxu0 0.0
  %676 = vmatpush1.msra.mxu0 0.0
  %677 = vmatprep.subr.mxu0 0.0
  %678 = vmatpush1.msra.mxu0 0.0
  %679 = vmatprep.subr.mxu0 0.0
  %680 = vmatpush1.msra.mxu0 0.0
  %681 = vmatprep.subr.mxu0 0.0
  %682 = vmatpush1.msra.mxu0 0.0
  %683 = vmatprep.subr.mxu0 0.0
  %684 = vmatpush1.msra.mxu0 0.0
  %685 = vmatprep.subr.mxu0 0.0
  %686 = vmatpush1.msra.mxu0 0.0
  %687 = vmatprep.subr.mxu0 0.0
  %688 = vmatpush1.msra.mxu0 0.0
  %689 = vmatprep.subr.mxu0 0.0
  %690 = vmatpush1.msra.mxu0 0.0
  %691 = vmatprep.subr.mxu0 0.0
  %692 = vmatpush1.msra.mxu0 0.0
  %693 = vmatprep.subr.mxu0 0.0
  %694 = vmatpush1.msra.mxu0 0.0
  %695 = vmatprep.subr.mxu0 0.0
  %696 = vmatpush1.msra.mxu0 0.0
  %697 = vmatprep.mubr.f32.mxu0 0.0
  %698 = vmatmul.mubr.f32.gmra.mrb[0].mxu0 %v436
  %v699 = vpop.f32.mrb[0].mxu0
  %v700 = vadd.f32 0.0, %v699
  %v701 = vpop.f32.mrb[0].mxu0
  %702 = vmatprep.mubr.f32.mxu0 0.0
  %703 = vmatmul.mubr.f32.gmra.mrb[0].mxu0 %v439
  %v704 = vpop.f32.mrb[0].mxu0
  %v705 = vadd.f32 0.0, %v704
  %v706 = vpop.f32.mrb[0].mxu0
  %707 = vmatprep.mubr.f32.mxu0 0.0
  %708 = vmatmul.mubr.f32.gmra.mrb[0].mxu0 %v442
  %v709 = vpop.f32.mrb[0].mxu0
  %v710 = vadd.f32 0.0, %v709
  %v711 = vpop.f32.mrb[0].mxu0
  %712 = vmatprep.mubr.f32.mxu0 0.0
  %713 = vmatmul.mubr.f32.gmra.mrb[0].mxu0 %v445
  %v714 = vpop.f32.mrb[0].mxu0
  %v715 = vadd.f32 0.0, %v714
  %v716 = vpop.f32.mrb[0].mxu0
  %717 = vmatprep.mubr.f32.mxu0 0.0
  %718 = vmatmul.mubr.f32.gmra.mrb[0].mxu0 %v448
  %v719 = vpop.f32.mrb[0].mxu0
  %v720 = vadd.f32 0.0, %v719
  %v721 = vpop.f32.mrb[0].mxu0
  %722 = vmatprep.mubr.f32.mxu0 0.0
  %723 = vmatmul.mubr.f32.gmra.mrb[0].mxu0 %v451
  %v724 = vpop.f32.mrb[0].mxu0
  %v725 = vadd.f32 0.0, %v724
  %v726 = vpop.f32.mrb[0].mxu0
  %727 = vmatprep.mubr.f32.mxu0 0.0
  %728 = vmatmul.mubr.f32.gmra.mrb[0].mxu0 %v454
  %v729 = vpop.f32.mrb[0].mxu0
  %v730 = vadd.f32 0.0, %v729
  %v731 = vpop.f32.mrb[0].mxu0
  %732 = vmatprep.mubr.f32.mxu0 0.0
  %733 = vmatmul.mubr.f32.gmra.mrb[0].mxu0 %v457
  %v734 = vpop.f32.mrb[0].mxu0
  %v735 = vadd.f32 0.0, %v734
  %v736 = vpop.f32.mrb[0].mxu0
  %737 = vmatprep.mubr.f32.mxu0 0.0
  %738 = vmatmul.mubr.f32.gmra.mrb[0].mxu0 %v460
  %v739 = vpop.f32.mrb[0].mxu0
  %v740 = vadd.f32 0.0, %v739
  %v741 = vpop.f32.mrb[0].mxu0
  %742 = vmatprep.mubr.f32.mxu0 0.0
  %743 = vmatmul.mubr.f32.gmra.mrb[0].mxu0 %v463
  %v744 = vpop.f32.mrb[0].mxu0
  %v745 = vadd.f32 0.0, %v744
  %v746 = vpop.f32.mrb[0].mxu0
  %747 = vmatprep.mubr.f32.mxu0 0.0
  %748 = vmatmul.mubr.f32.gmra.mrb[0].mxu0 %v466
  %v749 = vpop.f32.mrb[0].mxu0
  %v750 = vadd.f32 0.0, %v749
  %v751 = vpop.f32.mrb[0].mxu0
  %752 = vmatprep.mubr.f32.mxu0 0.0
  %753 = vmatmul.mubr.f32.gmra.mrb[0].mxu0 %v469
  %v754 = vpop.f32.mrb[0].mxu0
  %v755 = vadd.f32 0.0, %v754
  %v756 = vpop.f32.mrb[0].mxu0
  %757 = vmatprep.mubr.f32.mxu0 0.0
  %758 = vmatmul.mubr.f32.gmra.mrb[0].mxu0 %v472
  %v759 = vpop.f32.mrb[0].mxu0
  %v760 = vadd.f32 0.0, %v759
  %v761 = vpop.f32.mrb[0].mxu0
  %762 = vmatprep.mubr.f32.mxu0 0.0
  %763 = vmatmul.mubr.f32.gmra.mrb[0].mxu0 %v475
  %v764 = vpop.f32.mrb[0].mxu0
  %v765 = vadd.f32 0.0, %v764
  %v766 = vpop.f32.mrb[0].mxu0
  %767 = vmatprep.mubr.f32.mxu0 0.0
  %768 = vmatmul.mubr.f32.gmra.mrb[0].mxu0 %v478
  %v769 = vpop.f32.mrb[0].mxu0
  %v770 = vadd.f32 0.0, %v769
  %v771 = vpop.f32.mrb[0].mxu0
  %772 = vmatprep.mubr.f32.mxu0 0.0
  %773 = vmatmul.mubr.f32.gmra.mrb[0].mxu0 %v481
  %v774 = vpop.f32.mrb[0].mxu0
  %v775 = vadd.f32 0.0, %v774
  %v776 = vpop.f32.mrb[0].mxu0
  %777 = vdwg.mxu0
  %s778 = scalar_lea.vmem %s3, 64
  %v779 = vld [vmem:[%s778] sm:$0xff]
  %v780 = vld [vmem:[%s778 + $0x8] sm:$0xff]
  %v781 = vld [vmem:[%s778 + $0x10] sm:$0xff]
  %v782 = vld [vmem:[%s778 + $0x18] sm:$0xff]
  %783 = vmatprep.subr.mxu0 0.0
  %784 = vmatpush1.msra.mxu0 %v779
  %785 = vmatprep.subr.mxu0 0.0
  %786 = vmatpush1.msra.mxu0 %v780
  %787 = vmatprep.subr.mxu0 0.0
  %788 = vmatpush1.msra.mxu0 %v781
  %789 = vmatprep.subr.mxu0 0.0
  %790 = vmatpush1.msra.mxu0 %v782
  %791 = vmatprep.subr.mxu0 0.0
  %792 = vmatpush1.msra.mxu0 0.0
  %793 = vmatprep.subr.mxu0 0.0
  %794 = vmatpush1.msra.mxu0 0.0
  %795 = vmatprep.subr.mxu0 0.0
  %796 = vmatpush1.msra.mxu0 0.0
  %797 = vmatprep.subr.mxu0 0.0
  %798 = vmatpush1.msra.mxu0 0.0
  %799 = vmatprep.subr.mxu0 0.0
  %800 = vmatpush1.msra.mxu0 0.0
  %801 = vmatprep.subr.mxu0 0.0
  %802 = vmatpush1.msra.mxu0 0.0
  %803 = vmatprep.subr.mxu0 0.0
  %804 = vmatpush1.msra.mxu0 0.0
  %805 = vmatprep.subr.mxu0 0.0
  %806 = vmatpush1.msra.mxu0 0.0
  %807 = vmatprep.subr.mxu0 0.0
  %808 = vmatpush1.msra.mxu0 0.0
  %809 = vmatprep.subr.mxu0 0.0
  %810 = vmatpush1.msra.mxu0 0.0
  %811 = vmatprep.subr.mxu0 0.0
  %812 = vmatpush1.msra.mxu0 0.0
  %813 = vmatprep.subr.mxu0 0.0
  %814 = vmatpush1.msra.mxu0 0.0
  %815 = vmatprep.subr.mxu0 0.0
  %816 = vmatpush1.msra.mxu0 0.0
  %817 = vmatprep.subr.mxu0 0.0
  %818 = vmatpush1.msra.mxu0 0.0
  %819 = vmatprep.subr.mxu0 0.0
  %820 = vmatpush1.msra.mxu0 0.0
  %821 = vmatprep.subr.mxu0 0.0
  %822 = vmatpush1.msra.mxu0 0.0
  %823 = vmatprep.subr.mxu0 0.0
  %824 = vmatpush1.msra.mxu0 0.0
  %825 = vmatprep.subr.mxu0 0.0
  %826 = vmatpush1.msra.mxu0 0.0
  %827 = vmatprep.subr.mxu0 0.0
  %828 = vmatpush1.msra.mxu0 0.0
  %829 = vmatprep.subr.mxu0 0.0
  %830 = vmatpush1.msra.mxu0 0.0
  %831 = vmatprep.subr.mxu0 0.0
  %832 = vmatpush1.msra.mxu0 0.0
  %833 = vmatprep.subr.mxu0 0.0
  %834 = vmatpush1.msra.mxu0 0.0
  %835 = vmatprep.subr.mxu0 0.0
  %836 = vmatpush1.msra.mxu0 0.0
  %837 = vmatprep.subr.mxu0 0.0
  %838 = vmatpush1.msra.mxu0 0.0
  %839 = vmatprep.subr.mxu0 0.0
  %840 = vmatpush1.msra.mxu0 0.0
  %841 = vmatprep.subr.mxu0 0.0
  %842 = vmatpush1.msra.mxu0 0.0
  %843 = vmatprep.subr.mxu0 0.0
  %844 = vmatpush1.msra.mxu0 0.0
  %845 = vmatprep.subr.mxu0 0.0
  %846 = vmatpush1.msra.mxu0 0.0
  %847 = vmatprep.mubr.f32.mxu0 0.0
  %848 = vmatmul.mubr.f32.gmra.mrb[0].mxu0 %v436
  %v849 = vpop.f32.mrb[0].mxu0
  %v850 = vadd.f32 0.0, %v849
  %v851 = vpop.f32.mrb[0].mxu0
  %852 = vmatprep.mubr.f32.mxu0 0.0
  %853 = vmatmul.mubr.f32.gmra.mrb[0].mxu0 %v439
  %v854 = vpop.f32.mrb[0].mxu0
  %v855 = vadd.f32 0.0, %v854
  %v856 = vpop.f32.mrb[0].mxu0
  %857 = vmatprep.mubr.f32.mxu0 0.0
  %858 = vmatmul.mubr.f32.gmra.mrb[0].mxu0 %v442
  %v859 = vpop.f32.mrb[0].mxu0
  %v860 = vadd.f32 0.0, %v859
  %v861 = vpop.f32.mrb[0].mxu0
  %862 = vmatprep.mubr.f32.mxu0 0.0
  %863 = vmatmul.mubr.f32.gmra.mrb[0].mxu0 %v445
  %v864 = vpop.f32.mrb[0].mxu0
  %v865 = vadd.f32 0.0, %v864
  %v866 = vpop.f32.mrb[0].mxu0
  %867 = vmatprep.mubr.f32.mxu0 0.0
  %868 = vmatmul.mubr.f32.gmra.mrb[0].mxu0 %v448
  %v869 = vpop.f32.mrb[0].mxu0
  %v870 = vadd.f32 0.0, %v869
  %v871 = vpop.f32.mrb[0].mxu0
  %872 = vmatprep.mubr.f32.mxu0 0.0
  %873 = vmatmul.mubr.f32.gmra.mrb[0].mxu0 %v451
  %v874 = vpop.f32.mrb[0].mxu0
  %v875 = vadd.f32 0.0, %v874
  %v876 = vpop.f32.mrb[0].mxu0
  %877 = vmatprep.mubr.f32.mxu0 0.0
  %878 = vmatmul.mubr.f32.gmra.mrb[0].mxu0 %v454
  %v879 = vpop.f32.mrb[0].mxu0
  %v880 = vadd.f32 0.0, %v879
  %v881 = vpop.f32.mrb[0].mxu0
  %882 = vmatprep.mubr.f32.mxu0 0.0
  %883 = vmatmul.mubr.f32.gmra.mrb[0].mxu0 %v457
  %v884 = vpop.f32.mrb[0].mxu0
  %v885 = vadd.f32 0.0, %v884
  %v886 = vpop.f32.mrb[0].mxu0
  %887 = vmatprep.mubr.f32.mxu0 0.0
  %888 = vmatmul.mubr.f32.gmra.mrb[0].mxu0 %v460
  %v889 = vpop.f32.mrb[0].mxu0
  %v890 = vadd.f32 0.0, %v889
  %v891 = vpop.f32.mrb[0].mxu0
  %892 = vmatprep.mubr.f32.mxu0 0.0
  %893 = vmatmul.mubr.f32.gmra.mrb[0].mxu0 %v463
  %v894 = vpop.f32.mrb[0].mxu0
  %v895 = vadd.f32 0.0, %v894
  %v896 = vpop.f32.mrb[0].mxu0
  %897 = vmatprep.mubr.f32.mxu0 0.0
  %898 = vmatmul.mubr.f32.gmra.mrb[0].mxu0 %v466
  %v899 = vpop.f32.mrb[0].mxu0
  %v900 = vadd.f32 0.0, %v899
  %v901 = vpop.f32.mrb[0].mxu0
  %902 = vmatprep.mubr.f32.mxu0 0.0
  %903 = vmatmul.mubr.f32.gmra.mrb[0].mxu0 %v469
  %v904 = vpop.f32.mrb[0].mxu0
  %v905 = vadd.f32 0.0, %v904
  %v906 = vpop.f32.mrb[0].mxu0
  %907 = vmatprep.mubr.f32.mxu0 0.0
  %908 = vmatmul.mubr.f32.gmra.mrb[0].mxu0 %v472
  %v909 = vpop.f32.mrb[0].mxu0
  %v910 = vadd.f32 0.0, %v909
  %v911 = vpop.f32.mrb[0].mxu0
  %912 = vmatprep.mubr.f32.mxu0 0.0
  %913 = vmatmul.mubr.f32.gmra.mrb[0].mxu0 %v475
  %v914 = vpop.f32.mrb[0].mxu0
  %v915 = vadd.f32 0.0, %v914
  %v916 = vpop.f32.mrb[0].mxu0
  %917 = vmatprep.mubr.f32.mxu0 0.0
  %918 = vmatmul.mubr.f32.gmra.mrb[0].mxu0 %v478
  %v919 = vpop.f32.mrb[0].mxu0
  %v920 = vadd.f32 0.0, %v919
  %v921 = vpop.f32.mrb[0].mxu0
  %922 = vmatprep.mubr.f32.mxu0 0.0
  %923 = vmatmul.mubr.f32.gmra.mrb[0].mxu0 %v481
  %v924 = vpop.f32.mrb[0].mxu0
  %v925 = vadd.f32 0.0, %v924
  %v926 = vpop.f32.mrb[0].mxu0
  %927 = vdwg.mxu0
  %v928 = vld [vmem:[%s4] sm:$0x1]
  %v930 = vlaneseq
  %v931 = vshrl.u32 %v930, 7
  %v932 = vsub.s32 0, %v931
  %v933 = vrot.slane %v928, %v932
  %935 = vmatprep.subr.mxu0 0.0
  %936 = vmatpush1.msra.mxu0 %v550
  %937 = vmatprep.subr.mxu0 0.0
  %938 = vmatpush1.msra.mxu0 %v555
  %939 = vmatprep.subr.mxu0 0.0
  %940 = vmatpush1.msra.mxu0 %v560
  %941 = vmatprep.subr.mxu0 0.0
  %942 = vmatpush1.msra.mxu0 %v565
  %943 = vmatprep.subr.mxu0 0.0
  %944 = vmatpush1.msra.mxu0 %v570
  %945 = vmatprep.subr.mxu0 0.0
  %946 = vmatpush1.msra.mxu0 %v575
  %947 = vmatprep.subr.mxu0 0.0
  %948 = vmatpush1.msra.mxu0 %v580
  %949 = vmatprep.subr.mxu0 0.0
  %950 = vmatpush1.msra.mxu0 %v585
  %951 = vmatprep.subr.mxu0 0.0
  %952 = vmatpush1.msra.mxu0 %v590
  %953 = vmatprep.subr.mxu0 0.0
  %954 = vmatpush1.msra.mxu0 %v595
  %955 = vmatprep.subr.mxu0 0.0
  %956 = vmatpush1.msra.mxu0 %v600
  %957 = vmatprep.subr.mxu0 0.0
  %958 = vmatpush1.msra.mxu0 %v605
  %959 = vmatprep.subr.mxu0 0.0
  %960 = vmatpush1.msra.mxu0 %v610
  %961 = vmatprep.subr.mxu0 0.0
  %962 = vmatpush1.msra.mxu0 %v615
  %963 = vmatprep.subr.mxu0 0.0
  %964 = vmatpush1.msra.mxu0 %v620
  %965 = vmatprep.subr.mxu0 0.0
  %966 = vmatpush1.msra.mxu0 %v625
  %967 = vmatprep.subr.mxu0 0.0
  %968 = vmatpush1.msra.mxu0 %v700
  %969 = vmatprep.subr.mxu0 0.0
  %970 = vmatpush1.msra.mxu0 %v705
  %971 = vmatprep.subr.mxu0 0.0
  %972 = vmatpush1.msra.mxu0 %v710
  %973 = vmatprep.subr.mxu0 0.0
  %974 = vmatpush1.msra.mxu0 %v715
  %975 = vmatprep.subr.mxu0 0.0
  %976 = vmatpush1.msra.mxu0 %v720
  %977 = vmatprep.subr.mxu0 0.0
  %978 = vmatpush1.msra.mxu0 %v725
  %979 = vmatprep.subr.mxu0 0.0
  %980 = vmatpush1.msra.mxu0 %v730
  %981 = vmatprep.subr.mxu0 0.0
  %982 = vmatpush1.msra.mxu0 %v735
  %983 = vmatprep.subr.mxu0 0.0
  %984 = vmatpush1.msra.mxu0 %v740
  %985 = vmatprep.subr.mxu0 0.0
  %986 = vmatpush1.msra.mxu0 %v745
  %987 = vmatprep.subr.mxu0 0.0
  %988 = vmatpush1.msra.mxu0 %v750
  %989 = vmatprep.subr.mxu0 0.0
  %990 = vmatpush1.msra.mxu0 %v755
  %991 = vmatprep.subr.mxu0 0.0
  %992 = vmatpush1.msra.mxu0 %v760
  %993 = vmatprep.subr.mxu0 0.0
  %994 = vmatpush1.msra.mxu0 %v765
  %995 = vmatprep.subr.mxu0 0.0
  %996 = vmatpush1.msra.mxu0 %v770
  %997 = vmatprep.subr.mxu0 0.0
  %998 = vmatpush1.msra.mxu0 %v775
  %999 = vmatprep.mubr.f32.mxu0 %v268
  %1000 = vmatmul.mubr.f32.gmra.mrb[0].mxu0 %v138
  %v1001 = vpop.f32.mrb[0].mxu0
  %v1002 = vadd.f32 %v933, %v1001
  %v1003 = vpop.f32.mrb[0].mxu0
  %1004 = vmatprep.mubr.f32.mxu0 %v269
  %1005 = vmatmul.mubr.f32.gmra.mrb[0].mxu0 %v139
  %v1006 = vpop.f32.mrb[0].mxu0
  %v1007 = vadd.f32 %v933, %v1006
  %v1008 = vpop.f32.mrb[0].mxu0
  %1009 = vmatprep.mubr.f32.mxu0 %v270
  %1010 = vmatmul.mubr.f32.gmra.mrb[0].mxu0 %v140
  %v1011 = vpop.f32.mrb[0].mxu0
  %v1012 = vadd.f32 %v933, %v1011
  %v1013 = vpop.f32.mrb[0].mxu0
  %1014 = vmatprep.mubr.f32.mxu0 %v271
  %1015 = vmatmul.mubr.f32.gmra.mrb[0].mxu0 %v141
  %v1016 = vpop.f32.mrb[0].mxu0
  %v1017 = vadd.f32 %v933, %v1016
  %v1018 = vpop.f32.mrb[0].mxu0
  %1019 = vmatprep.mubr.f32.mxu0 %v272
  %1020 = vmatmul.mubr.f32.gmra.mrb[0].mxu0 %v142
  %v1021 = vpop.f32.mrb[0].mxu0
  %v1022 = vadd.f32 %v933, %v1021
  %v1023 = vpop.f32.mrb[0].mxu0
  %1024 = vmatprep.mubr.f32.mxu0 %v273
  %1025 = vmatmul.mubr.f32.gmra.mrb[0].mxu0 %v143
  %v1026 = vpop.f32.mrb[0].mxu0
  %v1027 = vadd.f32 %v933, %v1026
  %v1028 = vpop.f32.mrb[0].mxu0
  %1029 = vmatprep.mubr.f32.mxu0 %v274
  %1030 = vmatmul.mubr.f32.gmra.mrb[0].mxu0 %v144
  %v1031 = vpop.f32.mrb[0].mxu0
  %v1032 = vadd.f32 %v933, %v1031
  %v1033 = vpop.f32.mrb[0].mxu0
  %1034 = vmatprep.mubr.f32.mxu0 %v275
  %1035 = vmatmul.mubr.f32.gmra.mrb[0].mxu0 %v145
  %v1036 = vpop.f32.mrb[0].mxu0
  %v1037 = vadd.f32 %v933, %v1036
  %v1038 = vpop.f32.mrb[0].mxu0
  %1039 = vmatprep.mubr.f32.mxu0 %v276
  %1040 = vmatmul.mubr.f32.gmra.mrb[0].mxu0 %v146
  %v1041 = vpop.f32.mrb[0].mxu0
  %v1042 = vadd.f32 %v933, %v1041
  %v1043 = vpop.f32.mrb[0].mxu0
  %1044 = vmatprep.mubr.f32.mxu0 %v277
  %1045 = vmatmul.mubr.f32.gmra.mrb[0].mxu0 %v147
  %v1046 = vpop.f32.mrb[0].mxu0
  %v1047 = vadd.f32 %v933, %v1046
  %v1048 = vpop.f32.mrb[0].mxu0
  %1049 = vmatprep.mubr.f32.mxu0 %v278
  %1050 = vmatmul.mubr.f32.gmra.mrb[0].mxu0 %v148
  %v1051 = vpop.f32.mrb[0].mxu0
  %v1052 = vadd.f32 %v933, %v1051
  %v1053 = vpop.f32.mrb[0].mxu0
  %1054 = vmatprep.mubr.f32.mxu0 %v279
  %1055 = vmatmul.mubr.f32.gmra.mrb[0].mxu0 %v149
  %v1056 = vpop.f32.mrb[0].mxu0
  %v1057 = vadd.f32 %v933, %v1056
  %v1058 = vpop.f32.mrb[0].mxu0
  %1059 = vmatprep.mubr.f32.mxu0 %v280
  %1060 = vmatmul.mubr.f32.gmra.mrb[0].mxu0 %v150
  %v1061 = vpop.f32.mrb[0].mxu0
  %v1062 = vadd.f32 %v933, %v1061
  %v1063 = vpop.f32.mrb[0].mxu0
  %1064 = vmatprep.mubr.f32.mxu0 %v281
  %1065 = vmatmul.mubr.f32.gmra.mrb[0].mxu0 %v151
  %v1066 = vpop.f32.mrb[0].mxu0
  %v1067 = vadd.f32 %v933, %v1066
  %v1068 = vpop.f32.mrb[0].mxu0
  %1069 = vmatprep.mubr.f32.mxu0 %v282
  %1070 = vmatmul.mubr.f32.gmra.mrb[0].mxu0 %v152
  %v1071 = vpop.f32.mrb[0].mxu0
  %v1072 = vadd.f32 %v933, %v1071
  %v1073 = vpop.f32.mrb[0].mxu0
  %1074 = vmatprep.mubr.f32.mxu0 %v283
  %1075 = vmatmul.mubr.f32.gmra.mrb[0].mxu0 %v153
  %v1076 = vpop.f32.mrb[0].mxu0
  %v1077 = vadd.f32 %v933, %v1076
  %v1078 = vpop.f32.mrb[0].mxu0
  %1079 = vdwg.mxu0
  %1080 = vmatprep.subr.mxu0 0.0
  %1081 = vmatpush1.msra.mxu0 %v850
  %1082 = vmatprep.subr.mxu0 0.0
  %1083 = vmatpush1.msra.mxu0 %v855
  %1084 = vmatprep.subr.mxu0 0.0
  %1085 = vmatpush1.msra.mxu0 %v860
  %1086 = vmatprep.subr.mxu0 0.0
  %1087 = vmatpush1.msra.mxu0 %v865
  %1088 = vmatprep.subr.mxu0 0.0
  %1089 = vmatpush1.msra.mxu0 %v870
  %1090 = vmatprep.subr.mxu0 0.0
  %1091 = vmatpush1.msra.mxu0 %v875
  %1092 = vmatprep.subr.mxu0 0.0
  %1093 = vmatpush1.msra.mxu0 %v880
  %1094 = vmatprep.subr.mxu0 0.0
  %1095 = vmatpush1.msra.mxu0 %v885
  %1096 = vmatprep.subr.mxu0 0.0
  %1097 = vmatpush1.msra.mxu0 %v890
  %1098 = vmatprep.subr.mxu0 0.0
  %1099 = vmatpush1.msra.mxu0 %v895
  %1100 = vmatprep.subr.mxu0 0.0
  %1101 = vmatpush1.msra.mxu0 %v900
  %1102 = vmatprep.subr.mxu0 0.0
  %1103 = vmatpush1.msra.mxu0 %v905
  %1104 = vmatprep.subr.mxu0 0.0
  %1105 = vmatpush1.msra.mxu0 %v910
  %1106 = vmatprep.subr.mxu0 0.0
  %1107 = vmatpush1.msra.mxu0 %v915
  %1108 = vmatprep.subr.mxu0 0.0
  %1109 = vmatpush1.msra.mxu0 %v920
  %1110 = vmatprep.subr.mxu0 0.0
  %1111 = vmatpush1.msra.mxu0 %v925
  %1112 = vmatprep.subr.mxu0 0.0
  %1113 = vmatpush1.msra.mxu0 0.0
  %1114 = vmatprep.subr.mxu0 0.0
  %1115 = vmatpush1.msra.mxu0 0.0
  %1116 = vmatprep.subr.mxu0 0.0
  %1117 = vmatpush1.msra.mxu0 0.0
  %1118 = vmatprep.subr.mxu0 0.0
  %1119 = vmatpush1.msra.mxu0 0.0
  %1120 = vmatprep.subr.mxu0 0.0
  %1121 = vmatpush1.msra.mxu0 0.0
  %1122 = vmatprep.subr.mxu0 0.0
  %1123 = vmatpush1.msra.mxu0 0.0
  %1124 = vmatprep.subr.mxu0 0.0
  %1125 = vmatpush1.msra.mxu0 0.0
  %1126 = vmatprep.subr.mxu0 0.0
  %1127 = vmatpush1.msra.mxu0 0.0
  %1128 = vmatprep.subr.mxu0 0.0
  %1129 = vmatpush1.msra.mxu0 0.0
  %1130 = vmatprep.subr.mxu0 0.0
  %1131 = vmatpush1.msra.mxu0 0.0
  %1132 = vmatprep.subr.mxu0 0.0
  %1133 = vmatpush1.msra.mxu0 0.0
  %1134 = vmatprep.subr.mxu0 0.0
  %1135 = vmatpush1.msra.mxu0 0.0
  %1136 = vmatprep.subr.mxu0 0.0
  %1137 = vmatpush1.msra.mxu0 0.0
  %1138 = vmatprep.subr.mxu0 0.0
  %1139 = vmatpush1.msra.mxu0 0.0
  %1140 = vmatprep.subr.mxu0 0.0
  %1141 = vmatpush1.msra.mxu0 0.0
  %1142 = vmatprep.subr.mxu0 0.0
  %1143 = vmatpush1.msra.mxu0 0.0
  %1144 = vmatprep.mubr.f32.mxu0 0.0
  %1145 = vmatmul.mubr.f32.gmra.mrb[0].mxu0 %v398
  %v1146 = vpop.f32.mrb[0].mxu0
  %v1147 = vadd.f32 %v1002, %v1146
  %v1148 = vpop.f32.mrb[0].mxu0
  %1149 = vmatprep.mubr.f32.mxu0 0.0
  %1150 = vmatmul.mubr.f32.gmra.mrb[0].mxu0 %v399
  %v1151 = vpop.f32.mrb[0].mxu0
  %v1152 = vadd.f32 %v1007, %v1151
  %v1153 = vpop.f32.mrb[0].mxu0
  %1154 = vmatprep.mubr.f32.mxu0 0.0
  %1155 = vmatmul.mubr.f32.gmra.mrb[0].mxu0 %v400
  %v1156 = vpop.f32.mrb[0].mxu0
  %v1157 = vadd.f32 %v1012, %v1156
  %v1158 = vpop.f32.mrb[0].mxu0
  %1159 = vmatprep.mubr.f32.mxu0 0.0
  %1160 = vmatmul.mubr.f32.gmra.mrb[0].mxu0 %v401
  %v1161 = vpop.f32.mrb[0].mxu0
  %v1162 = vadd.f32 %v1017, %v1161
  %v1163 = vpop.f32.mrb[0].mxu0
  %1164 = vmatprep.mubr.f32.mxu0 0.0
  %1165 = vmatmul.mubr.f32.gmra.mrb[0].mxu0 %v402
  %v1166 = vpop.f32.mrb[0].mxu0
  %v1167 = vadd.f32 %v1022, %v1166
  %v1168 = vpop.f32.mrb[0].mxu0
  %1169 = vmatprep.mubr.f32.mxu0 0.0
  %1170 = vmatmul.mubr.f32.gmra.mrb[0].mxu0 %v403
  %v1171 = vpop.f32.mrb[0].mxu0
  %v1172 = vadd.f32 %v1027, %v1171
  %v1173 = vpop.f32.mrb[0].mxu0
  %1174 = vmatprep.mubr.f32.mxu0 0.0
  %1175 = vmatmul.mubr.f32.gmra.mrb[0].mxu0 %v404
  %v1176 = vpop.f32.mrb[0].mxu0
  %v1177 = vadd.f32 %v1032, %v1176
  %v1178 = vpop.f32.mrb[0].mxu0
  %1179 = vmatprep.mubr.f32.mxu0 0.0
  %1180 = vmatmul.mubr.f32.gmra.mrb[0].mxu0 %v405
  %v1181 = vpop.f32.mrb[0].mxu0
  %v1182 = vadd.f32 %v1037, %v1181
  %v1183 = vpop.f32.mrb[0].mxu0
  %1184 = vmatprep.mubr.f32.mxu0 0.0
  %1185 = vmatmul.mubr.f32.gmra.mrb[0].mxu0 %v406
  %v1186 = vpop.f32.mrb[0].mxu0
  %v1187 = vadd.f32 %v1042, %v1186
  %v1188 = vpop.f32.mrb[0].mxu0
  %1189 = vmatprep.mubr.f32.mxu0 0.0
  %1190 = vmatmul.mubr.f32.gmra.mrb[0].mxu0 %v407
  %v1191 = vpop.f32.mrb[0].mxu0
  %v1192 = vadd.f32 %v1047, %v1191
  %v1193 = vpop.f32.mrb[0].mxu0
  %1194 = vmatprep.mubr.f32.mxu0 0.0
  %1195 = vmatmul.mubr.f32.gmra.mrb[0].mxu0 %v408
  %v1196 = vpop.f32.mrb[0].mxu0
  %v1197 = vadd.f32 %v1052, %v1196
  %v1198 = vpop.f32.mrb[0].mxu0
  %1199 = vmatprep.mubr.f32.mxu0 0.0
  %1200 = vmatmul.mubr.f32.gmra.mrb[0].mxu0 %v409
  %v1201 = vpop.f32.mrb[0].mxu0
  %v1202 = vadd.f32 %v1057, %v1201
  %v1203 = vpop.f32.mrb[0].mxu0
  %1204 = vmatprep.mubr.f32.mxu0 0.0
  %1205 = vmatmul.mubr.f32.gmra.mrb[0].mxu0 %v410
  %v1206 = vpop.f32.mrb[0].mxu0
  %v1207 = vadd.f32 %v1062, %v1206
  %v1208 = vpop.f32.mrb[0].mxu0
  %1209 = vmatprep.mubr.f32.mxu0 0.0
  %1210 = vmatmul.mubr.f32.gmra.mrb[0].mxu0 %v411
  %v1211 = vpop.f32.mrb[0].mxu0
  %v1212 = vadd.f32 %v1067, %v1211
  %v1213 = vpop.f32.mrb[0].mxu0
  %1214 = vmatprep.mubr.f32.mxu0 0.0
  %1215 = vmatmul.mubr.f32.gmra.mrb[0].mxu0 %v412
  %v1216 = vpop.f32.mrb[0].mxu0
  %v1217 = vadd.f32 %v1072, %v1216
  %v1218 = vpop.f32.mrb[0].mxu0
  %1219 = vmatprep.mubr.f32.mxu0 0.0
  %1220 = vmatmul.mubr.f32.gmra.mrb[0].mxu0 %v413
  %v1221 = vpop.f32.mrb[0].mxu0
  %v1222 = vadd.f32 %v1077, %v1221
  %v1223 = vpop.f32.mrb[0].mxu0
  %1224 = vdwg.mxu0
  %v1225 = vmax.f32 %v1147, 0.0
  %v1226 = vmax.f32 %v1152, 0.0
  %v1227 = vmax.f32 %v1157, 0.0
  %v1228 = vmax.f32 %v1162, 0.0
  %v1229 = vmax.f32 %v1167, 0.0
  %v1230 = vmax.f32 %v1172, 0.0
  %v1231 = vmax.f32 %v1177, 0.0
  %v1232 = vmax.f32 %v1182, 0.0
  %v1233 = vmax.f32 %v1187, 0.0
  %v1234 = vmax.f32 %v1192, 0.0
  %v1235 = vmax.f32 %v1197, 0.0
  %v1236 = vmax.f32 %v1202, 0.0
  %v1237 = vmax.f32 %v1207, 0.0
  %v1238 = vmax.f32 %v1212, 0.0
  %v1239 = vmax.f32 %v1217, 0.0
  %v1240 = vmax.f32 %v1222, 0.0
  %v1241 = vld [vmem:[%s5] sm:$0xff]
  %v1242 = vld [vmem:[%s5 + $0x8] sm:$0xff]
  %vm1243 = vcmask 130048
  %v1245 = vsel %vm1243, %v1225, 0
  %v1248 = vsel %vm1243, %v1226, 0
  %v1251 = vsel %vm1243, %v1227, 0
  %v1254 = vsel %vm1243, %v1228, 0
  %v1257 = vsel %vm1243, %v1229, 0
  %v1260 = vsel %vm1243, %v1230, 0
  %v1263 = vsel %vm1243, %v1231, 0
  %v1266 = vsel %vm1243, %v1232, 0
  %v1269 = vsel %vm1243, %v1233, 0
  %v1272 = vsel %vm1243, %v1234, 0
  %v1275 = vsel %vm1243, %v1235, 0
  %v1278 = vsel %vm1243, %v1236, 0
  %v1281 = vsel %vm1243, %v1237, 0
  %v1284 = vsel %vm1243, %v1238, 0
  %v1287 = vsel %vm1243, %v1239, 0
  %v1290 = vsel %vm1243, %v1240, 0
  %1292 = vmatprep.subr.mxu0 0.0
  %1293 = vmatpush1.msra.mxu0 %v1241
  %1294 = vmatprep.subr.mxu0 0.0
  %1295 = vmatpush1.msra.mxu0 %v1242
  %1296 = vmatprep.subr.mxu0 0.0
  %1297 = vmatpush1.msra.mxu0 0.0
  %1298 = vmatprep.subr.mxu0 0.0
  %1299 = vmatpush1.msra.mxu0 0.0
  %1300 = vmatprep.subr.mxu0 0.0
  %1301 = vmatpush1.msra.mxu0 0.0
  %1302 = vmatprep.subr.mxu0 0.0
  %1303 = vmatpush1.msra.mxu0 0.0
  %1304 = vmatprep.subr.mxu0 0.0
  %1305 = vmatpush1.msra.mxu0 0.0
  %1306 = vmatprep.subr.mxu0 0.0
  %1307 = vmatpush1.msra.mxu0 0.0
  %1308 = vmatprep.subr.mxu0 0.0
  %1309 = vmatpush1.msra.mxu0 0.0
  %1310 = vmatprep.subr.mxu0 0.0
  %1311 = vmatpush1.msra.mxu0 0.0
  %1312 = vmatprep.subr.mxu0 0.0
  %1313 = vmatpush1.msra.mxu0 0.0
  %1314 = vmatprep.subr.mxu0 0.0
  %1315 = vmatpush1.msra.mxu0 0.0
  %1316 = vmatprep.subr.mxu0 0.0
  %1317 = vmatpush1.msra.mxu0 0.0
  %1318 = vmatprep.subr.mxu0 0.0
  %1319 = vmatpush1.msra.mxu0 0.0
  %1320 = vmatprep.subr.mxu0 0.0
  %1321 = vmatpush1.msra.mxu0 0.0
  %1322 = vmatprep.subr.mxu0 0.0
  %1323 = vmatpush1.msra.mxu0 0.0
  %1324 = vmatprep.subr.mxu0 0.0
  %1325 = vmatpush1.msra.mxu0 0.0
  %1326 = vmatprep.subr.mxu0 0.0
  %1327 = vmatpush1.msra.mxu0 0.0
  %1328 = vmatprep.subr.mxu0 0.0
  %1329 = vmatpush1.msra.mxu0 0.0
  %1330 = vmatprep.subr.mxu0 0.0
  %1331 = vmatpush1.msra.mxu0 0.0
  %1332 = vmatprep.subr.mxu0 0.0
  %1333 = vmatpush1.msra.mxu0 0.0
  %1334 = vmatprep.subr.mxu0 0.0
  %1335 = vmatpush1.msra.mxu0 0.0
  %1336 = vmatprep.subr.mxu0 0.0
  %1337 = vmatpush1.msra.mxu0 0.0
  %1338 = vmatprep.subr.mxu0 0.0
  %1339 = vmatpush1.msra.mxu0 0.0
  %1340 = vmatprep.subr.mxu0 0.0
  %1341 = vmatpush1.msra.mxu0 0.0
  %1342 = vmatprep.subr.mxu0 0.0
  %1343 = vmatpush1.msra.mxu0 0.0
  %1344 = vmatprep.subr.mxu0 0.0
  %1345 = vmatpush1.msra.mxu0 0.0
  %1346 = vmatprep.subr.mxu0 0.0
  %1347 = vmatpush1.msra.mxu0 0.0
  %1348 = vmatprep.subr.mxu0 0.0
  %1349 = vmatpush1.msra.mxu0 0.0
  %1350 = vmatprep.subr.mxu0 0.0
  %1351 = vmatpush1.msra.mxu0 0.0
  %1352 = vmatprep.subr.mxu0 0.0
  %1353 = vmatpush1.msra.mxu0 0.0
  %1354 = vmatprep.subr.mxu0 0.0
  %1355 = vmatpush1.msra.mxu0 0.0
  %1356 = vmatprep.mubr.f32.mxu0 0.0
  %1357 = vmatmul.mubr.f32.gmra.mrb[0].mxu0 %v1245
  %v1358 = vpop.f32.mrb[0].mxu0
  %v1359 = vadd.f32 0.0, %v1358
  %v1360 = vpop.f32.mrb[0].mxu0
  %1361 = vmatprep.mubr.f32.mxu0 0.0
  %1362 = vmatmul.mubr.f32.gmra.mrb[0].mxu0 %v1248
  %v1363 = vpop.f32.mrb[0].mxu0
  %v1364 = vadd.f32 0.0, %v1363
  %v1365 = vpop.f32.mrb[0].mxu0
  %1366 = vmatprep.mubr.f32.mxu0 0.0
  %1367 = vmatmul.mubr.f32.gmra.mrb[0].mxu0 %v1251
  %v1368 = vpop.f32.mrb[0].mxu0
  %v1369 = vadd.f32 0.0, %v1368
  %v1370 = vpop.f32.mrb[0].mxu0
  %1371 = vmatprep.mubr.f32.mxu0 0.0
  %1372 = vmatmul.mubr.f32.gmra.mrb[0].mxu0 %v1254
  %v1373 = vpop.f32.mrb[0].mxu0
  %v1374 = vadd.f32 0.0, %v1373
  %v1375 = vpop.f32.mrb[0].mxu0
  %1376 = vmatprep.mubr.f32.mxu0 0.0
  %1377 = vmatmul.mubr.f32.gmra.mrb[0].mxu0 %v1257
  %v1378 = vpop.f32.mrb[0].mxu0
  %v1379 = vadd.f32 0.0, %v1378
  %v1380 = vpop.f32.mrb[0].mxu0
  %1381 = vmatprep.mubr.f32.mxu0 0.0
  %1382 = vmatmul.mubr.f32.gmra.mrb[0].mxu0 %v1260
  %v1383 = vpop.f32.mrb[0].mxu0
  %v1384 = vadd.f32 0.0, %v1383
  %v1385 = vpop.f32.mrb[0].mxu0
  %1386 = vmatprep.mubr.f32.mxu0 0.0
  %1387 = vmatmul.mubr.f32.gmra.mrb[0].mxu0 %v1263
  %v1388 = vpop.f32.mrb[0].mxu0
  %v1389 = vadd.f32 0.0, %v1388
  %v1390 = vpop.f32.mrb[0].mxu0
  %1391 = vmatprep.mubr.f32.mxu0 0.0
  %1392 = vmatmul.mubr.f32.gmra.mrb[0].mxu0 %v1266
  %v1393 = vpop.f32.mrb[0].mxu0
  %v1394 = vadd.f32 0.0, %v1393
  %v1395 = vpop.f32.mrb[0].mxu0
  %1396 = vmatprep.mubr.f32.mxu0 0.0
  %1397 = vmatmul.mubr.f32.gmra.mrb[0].mxu0 %v1269
  %v1398 = vpop.f32.mrb[0].mxu0
  %v1399 = vadd.f32 0.0, %v1398
  %v1400 = vpop.f32.mrb[0].mxu0
  %1401 = vmatprep.mubr.f32.mxu0 0.0
  %1402 = vmatmul.mubr.f32.gmra.mrb[0].mxu0 %v1272
  %v1403 = vpop.f32.mrb[0].mxu0
  %v1404 = vadd.f32 0.0, %v1403
  %v1405 = vpop.f32.mrb[0].mxu0
  %1406 = vmatprep.mubr.f32.mxu0 0.0
  %1407 = vmatmul.mubr.f32.gmra.mrb[0].mxu0 %v1275
  %v1408 = vpop.f32.mrb[0].mxu0
  %v1409 = vadd.f32 0.0, %v1408
  %v1410 = vpop.f32.mrb[0].mxu0
  %1411 = vmatprep.mubr.f32.mxu0 0.0
  %1412 = vmatmul.mubr.f32.gmra.mrb[0].mxu0 %v1278
  %v1413 = vpop.f32.mrb[0].mxu0
  %v1414 = vadd.f32 0.0, %v1413
  %v1415 = vpop.f32.mrb[0].mxu0
  %1416 = vmatprep.mubr.f32.mxu0 0.0
  %1417 = vmatmul.mubr.f32.gmra.mrb[0].mxu0 %v1281
  %v1418 = vpop.f32.mrb[0].mxu0
  %v1419 = vadd.f32 0.0, %v1418
  %v1420 = vpop.f32.mrb[0].mxu0
  %1421 = vmatprep.mubr.f32.mxu0 0.0
  %1422 = vmatmul.mubr.f32.gmra.mrb[0].mxu0 %v1284
  %v1423 = vpop.f32.mrb[0].mxu0
  %v1424 = vadd.f32 0.0, %v1423
  %v1425 = vpop.f32.mrb[0].mxu0
  %1426 = vmatprep.mubr.f32.mxu0 0.0
  %1427 = vmatmul.mubr.f32.gmra.mrb[0].mxu0 %v1287
  %v1428 = vpop.f32.mrb[0].mxu0
  %v1429 = vadd.f32 0.0, %v1428
  %v1430 = vpop.f32.mrb[0].mxu0
  %1431 = vmatprep.mubr.f32.mxu0 0.0
  %1432 = vmatmul.mubr.f32.gmra.mrb[0].mxu0 %v1290
  %v1433 = vpop.f32.mrb[0].mxu0
  %v1434 = vadd.f32 0.0, %v1433
  %v1435 = vpop.f32.mrb[0].mxu0
  %1436 = vdwg.mxu0
  %s1437 = scalar_lea.vmem %s5, 16
  %v1438 = vld [vmem:[%s1437] sm:$0xff]
  %v1439 = vld [vmem:[%s1437 + $0x8] sm:$0xff]
  %1440 = vmatprep.subr.mxu0 0.0
  %1441 = vmatpush1.msra.mxu0 %v1438
  %1442 = vmatprep.subr.mxu0 0.0
  %1443 = vmatpush1.msra.mxu0 %v1439
  %1444 = vmatprep.subr.mxu0 0.0
  %1445 = vmatpush1.msra.mxu0 0.0
  %1446 = vmatprep.subr.mxu0 0.0
  %1447 = vmatpush1.msra.mxu0 0.0
  %1448 = vmatprep.subr.mxu0 0.0
  %1449 = vmatpush1.msra.mxu0 0.0
  %1450 = vmatprep.subr.mxu0 0.0
  %1451 = vmatpush1.msra.mxu0 0.0
  %1452 = vmatprep.subr.mxu0 0.0
  %1453 = vmatpush1.msra.mxu0 0.0
  %1454 = vmatprep.subr.mxu0 0.0
  %1455 = vmatpush1.msra.mxu0 0.0
  %1456 = vmatprep.subr.mxu0 0.0
  %1457 = vmatpush1.msra.mxu0 0.0
  %1458 = vmatprep.subr.mxu0 0.0
  %1459 = vmatpush1.msra.mxu0 0.0
  %1460 = vmatprep.subr.mxu0 0.0
  %1461 = vmatpush1.msra.mxu0 0.0
  %1462 = vmatprep.subr.mxu0 0.0
  %1463 = vmatpush1.msra.mxu0 0.0
  %1464 = vmatprep.subr.mxu0 0.0
  %1465 = vmatpush1.msra.mxu0 0.0
  %1466 = vmatprep.subr.mxu0 0.0
  %1467 = vmatpush1.msra.mxu0 0.0
  %1468 = vmatprep.subr.mxu0 0.0
  %1469 = vmatpush1.msra.mxu0 0.0
  %1470 = vmatprep.subr.mxu0 0.0
  %1471 = vmatpush1.msra.mxu0 0.0
  %1472 = vmatprep.subr.mxu0 0.0
  %1473 = vmatpush1.msra.mxu0 0.0
  %1474 = vmatprep.subr.mxu0 0.0
  %1475 = vmatpush1.msra.mxu0 0.0
  %1476 = vmatprep.subr.mxu0 0.0
  %1477 = vmatpush1.msra.mxu0 0.0
  %1478 = vmatprep.subr.mxu0 0.0
  %1479 = vmatpush1.msra.mxu0 0.0
  %1480 = vmatprep.subr.mxu0 0.0
  %1481 = vmatpush1.msra.mxu0 0.0
  %1482 = vmatprep.subr.mxu0 0.0
  %1483 = vmatpush1.msra.mxu0 0.0
  %1484 = vmatprep.subr.mxu0 0.0
  %1485 = vmatpush1.msra.mxu0 0.0
  %1486 = vmatprep.subr.mxu0 0.0
  %1487 = vmatpush1.msra.mxu0 0.0
  %1488 = vmatprep.subr.mxu0 0.0
  %1489 = vmatpush1.msra.mxu0 0.0
  %1490 = vmatprep.subr.mxu0 0.0
  %1491 = vmatpush1.msra.mxu0 0.0
  %1492 = vmatprep.subr.mxu0 0.0
  %1493 = vmatpush1.msra.mxu0 0.0
  %1494 = vmatprep.subr.mxu0 0.0
  %1495 = vmatpush1.msra.mxu0 0.0
  %1496 = vmatprep.subr.mxu0 0.0
  %1497 = vmatpush1.msra.mxu0 0.0
  %1498 = vmatprep.subr.mxu0 0.0
  %1499 = vmatpush1.msra.mxu0 0.0
  %1500 = vmatprep.subr.mxu0 0.0
  %1501 = vmatpush1.msra.mxu0 0.0
  %1502 = vmatprep.subr.mxu0 0.0
  %1503 = vmatpush1.msra.mxu0 0.0
  %1504 = vmatprep.mubr.f32.mxu0 0.0
  %1505 = vmatmul.mubr.f32.gmra.mrb[0].mxu0 %v1245
  %v1506 = vpop.f32.mrb[0].mxu0
  %v1507 = vadd.f32 0.0, %v1506
  %v1508 = vpop.f32.mrb[0].mxu0
  %1509 = vmatprep.mubr.f32.mxu0 0.0
  %1510 = vmatmul.mubr.f32.gmra.mrb[0].mxu0 %v1248
  %v1511 = vpop.f32.mrb[0].mxu0
  %v1512 = vadd.f32 0.0, %v1511
  %v1513 = vpop.f32.mrb[0].mxu0
  %1514 = vmatprep.mubr.f32.mxu0 0.0
  %1515 = vmatmul.mubr.f32.gmra.mrb[0].mxu0 %v1251
  %v1516 = vpop.f32.mrb[0].mxu0
  %v1517 = vadd.f32 0.0, %v1516
  %v1518 = vpop.f32.mrb[0].mxu0
  %1519 = vmatprep.mubr.f32.mxu0 0.0
  %1520 = vmatmul.mubr.f32.gmra.mrb[0].mxu0 %v1254
  %v1521 = vpop.f32.mrb[0].mxu0
  %v1522 = vadd.f32 0.0, %v1521
  %v1523 = vpop.f32.mrb[0].mxu0
  %1524 = vmatprep.mubr.f32.mxu0 0.0
  %1525 = vmatmul.mubr.f32.gmra.mrb[0].mxu0 %v1257
  %v1526 = vpop.f32.mrb[0].mxu0
  %v1527 = vadd.f32 0.0, %v1526
  %v1528 = vpop.f32.mrb[0].mxu0
  %1529 = vmatprep.mubr.f32.mxu0 0.0
  %1530 = vmatmul.mubr.f32.gmra.mrb[0].mxu0 %v1260
  %v1531 = vpop.f32.mrb[0].mxu0
  %v1532 = vadd.f32 0.0, %v1531
  %v1533 = vpop.f32.mrb[0].mxu0
  %1534 = vmatprep.mubr.f32.mxu0 0.0
  %1535 = vmatmul.mubr.f32.gmra.mrb[0].mxu0 %v1263
  %v1536 = vpop.f32.mrb[0].mxu0
  %v1537 = vadd.f32 0.0, %v1536
  %v1538 = vpop.f32.mrb[0].mxu0
  %1539 = vmatprep.mubr.f32.mxu0 0.0
  %1540 = vmatmul.mubr.f32.gmra.mrb[0].mxu0 %v1266
  %v1541 = vpop.f32.mrb[0].mxu0
  %v1542 = vadd.f32 0.0, %v1541
  %v1543 = vpop.f32.mrb[0].mxu0
  %1544 = vmatprep.mubr.f32.mxu0 0.0
  %1545 = vmatmul.mubr.f32.gmra.mrb[0].mxu0 %v1269
  %v1546 = vpop.f32.mrb[0].mxu0
  %v1547 = vadd.f32 0.0, %v1546
  %v1548 = vpop.f32.mrb[0].mxu0
  %1549 = vmatprep.mubr.f32.mxu0 0.0
  %1550 = vmatmul.mubr.f32.gmra.mrb[0].mxu0 %v1272
  %v1551 = vpop.f32.mrb[0].mxu0
  %v1552 = vadd.f32 0.0, %v1551
  %v1553 = vpop.f32.mrb[0].mxu0
  %1554 = vmatprep.mubr.f32.mxu0 0.0
  %1555 = vmatmul.mubr.f32.gmra.mrb[0].mxu0 %v1275
  %v1556 = vpop.f32.mrb[0].mxu0
  %v1557 = vadd.f32 0.0, %v1556
  %v1558 = vpop.f32.mrb[0].mxu0
  %1559 = vmatprep.mubr.f32.mxu0 0.0
  %1560 = vmatmul.mubr.f32.gmra.mrb[0].mxu0 %v1278
  %v1561 = vpop.f32.mrb[0].mxu0
  %v1562 = vadd.f32 0.0, %v1561
  %v1563 = vpop.f32.mrb[0].mxu0
  %1564 = vmatprep.mubr.f32.mxu0 0.0
  %1565 = vmatmul.mubr.f32.gmra.mrb[0].mxu0 %v1281
  %v1566 = vpop.f32.mrb[0].mxu0
  %v1567 = vadd.f32 0.0, %v1566
  %v1568 = vpop.f32.mrb[0].mxu0
  %1569 = vmatprep.mubr.f32.mxu0 0.0
  %1570 = vmatmul.mubr.f32.gmra.mrb[0].mxu0 %v1284
  %v1571 = vpop.f32.mrb[0].mxu0
  %v1572 = vadd.f32 0.0, %v1571
  %v1573 = vpop.f32.mrb[0].mxu0
  %1574 = vmatprep.mubr.f32.mxu0 0.0
  %1575 = vmatmul.mubr.f32.gmra.mrb[0].mxu0 %v1287
  %v1576 = vpop.f32.mrb[0].mxu0
  %v1577 = vadd.f32 0.0, %v1576
  %v1578 = vpop.f32.mrb[0].mxu0
  %1579 = vmatprep.mubr.f32.mxu0 0.0
  %1580 = vmatmul.mubr.f32.gmra.mrb[0].mxu0 %v1290
  %v1581 = vpop.f32.mrb[0].mxu0
  %v1582 = vadd.f32 0.0, %v1581
  %v1583 = vpop.f32.mrb[0].mxu0
  %1584 = vdwg.mxu0
  %s1585 = scalar_lea.vmem %s5, 32
  %v1586 = vld [vmem:[%s1585] sm:$0xff]
  %v1587 = vld [vmem:[%s1585 + $0x8] sm:$0xff]
  %1588 = vmatprep.subr.mxu0 0.0
  %1589 = vmatpush1.msra.mxu0 %v1586
  %1590 = vmatprep.subr.mxu0 0.0
  %1591 = vmatpush1.msra.mxu0 %v1587
  %1592 = vmatprep.subr.mxu0 0.0
  %1593 = vmatpush1.msra.mxu0 0.0
  %1594 = vmatprep.subr.mxu0 0.0
  %1595 = vmatpush1.msra.mxu0 0.0
  %1596 = vmatprep.subr.mxu0 0.0
  %1597 = vmatpush1.msra.mxu0 0.0
  %1598 = vmatprep.subr.mxu0 0.0
  %1599 = vmatpush1.msra.mxu0 0.0
  %1600 = vmatprep.subr.mxu0 0.0
  %1601 = vmatpush1.msra.mxu0 0.0
  %1602 = vmatprep.subr.mxu0 0.0
  %1603 = vmatpush1.msra.mxu0 0.0
  %1604 = vmatprep.subr.mxu0 0.0
  %1605 = vmatpush1.msra.mxu0 0.0
  %1606 = vmatprep.subr.mxu0 0.0
  %1607 = vmatpush1.msra.mxu0 0.0
  %1608 = vmatprep.subr.mxu0 0.0
  %1609 = vmatpush1.msra.mxu0 0.0
  %1610 = vmatprep.subr.mxu0 0.0
  %1611 = vmatpush1.msra.mxu0 0.0
  %1612 = vmatprep.subr.mxu0 0.0
  %1613 = vmatpush1.msra.mxu0 0.0
  %1614 = vmatprep.subr.mxu0 0.0
  %1615 = vmatpush1.msra.mxu0 0.0
  %1616 = vmatprep.subr.mxu0 0.0
  %1617 = vmatpush1.msra.mxu0 0.0
  %1618 = vmatprep.subr.mxu0 0.0
  %1619 = vmatpush1.msra.mxu0 0.0
  %1620 = vmatprep.subr.mxu0 0.0
  %1621 = vmatpush1.msra.mxu0 0.0
  %1622 = vmatprep.subr.mxu0 0.0
  %1623 = vmatpush1.msra.mxu0 0.0
  %1624 = vmatprep.subr.mxu0 0.0
  %1625 = vmatpush1.msra.mxu0 0.0
  %1626 = vmatprep.subr.mxu0 0.0
  %1627 = vmatpush1.msra.mxu0 0.0
  %1628 = vmatprep.subr.mxu0 0.0
  %1629 = vmatpush1.msra.mxu0 0.0
  %1630 = vmatprep.subr.mxu0 0.0
  %1631 = vmatpush1.msra.mxu0 0.0
  %1632 = vmatprep.subr.mxu0 0.0
  %1633 = vmatpush1.msra.mxu0 0.0
  %1634 = vmatprep.subr.mxu0 0.0
  %1635 = vmatpush1.msra.mxu0 0.0
  %1636 = vmatprep.subr.mxu0 0.0
  %1637 = vmatpush1.msra.mxu0 0.0
  %1638 = vmatprep.subr.mxu0 0.0
  %1639 = vmatpush1.msra.mxu0 0.0
  %1640 = vmatprep.subr.mxu0 0.0
  %1641 = vmatpush1.msra.mxu0 0.0
  %1642 = vmatprep.subr.mxu0 0.0
  %1643 = vmatpush1.msra.mxu0 0.0
  %1644 = vmatprep.subr.mxu0 0.0
  %1645 = vmatpush1.msra.mxu0 0.0
  %1646 = vmatprep.subr.mxu0 0.0
  %1647 = vmatpush1.msra.mxu0 0.0
  %1648 = vmatprep.subr.mxu0 0.0
  %1649 = vmatpush1.msra.mxu0 0.0
  %1650 = vmatprep.subr.mxu0 0.0
  %1651 = vmatpush1.msra.mxu0 0.0
  %1652 = vmatprep.mubr.f32.mxu0 0.0
  %1653 = vmatmul.mubr.f32.gmra.mrb[0].mxu0 %v1245
  %v1654 = vpop.f32.mrb[0].mxu0
  %v1655 = vadd.f32 0.0, %v1654
  %v1656 = vpop.f32.mrb[0].mxu0
  %1657 = vmatprep.mubr.f32.mxu0 0.0
  %1658 = vmatmul.mubr.f32.gmra.mrb[0].mxu0 %v1248
  %v1659 = vpop.f32.mrb[0].mxu0
  %v1660 = vadd.f32 0.0, %v1659
  %v1661 = vpop.f32.mrb[0].mxu0
  %1662 = vmatprep.mubr.f32.mxu0 0.0
  %1663 = vmatmul.mubr.f32.gmra.mrb[0].mxu0 %v1251
  %v1664 = vpop.f32.mrb[0].mxu0
  %v1665 = vadd.f32 0.0, %v1664
  %v1666 = vpop.f32.mrb[0].mxu0
  %1667 = vmatprep.mubr.f32.mxu0 0.0
  %1668 = vmatmul.mubr.f32.gmra.mrb[0].mxu0 %v1254
  %v1669 = vpop.f32.mrb[0].mxu0
  %v1670 = vadd.f32 0.0, %v1669
  %v1671 = vpop.f32.mrb[0].mxu0
  %1672 = vmatprep.mubr.f32.mxu0 0.0
  %1673 = vmatmul.mubr.f32.gmra.mrb[0].mxu0 %v1257
  %v1674 = vpop.f32.mrb[0].mxu0
  %v1675 = vadd.f32 0.0, %v1674
  %v1676 = vpop.f32.mrb[0].mxu0
  %1677 = vmatprep.mubr.f32.mxu0 0.0
  %1678 = vmatmul.mubr.f32.gmra.mrb[0].mxu0 %v1260
  %v1679 = vpop.f32.mrb[0].mxu0
  %v1680 = vadd.f32 0.0, %v1679
  %v1681 = vpop.f32.mrb[0].mxu0
  %1682 = vmatprep.mubr.f32.mxu0 0.0
  %1683 = vmatmul.mubr.f32.gmra.mrb[0].mxu0 %v1263
  %v1684 = vpop.f32.mrb[0].mxu0
  %v1685 = vadd.f32 0.0, %v1684
  %v1686 = vpop.f32.mrb[0].mxu0
  %1687 = vmatprep.mubr.f32.mxu0 0.0
  %1688 = vmatmul.mubr.f32.gmra.mrb[0].mxu0 %v1266
  %v1689 = vpop.f32.mrb[0].mxu0
  %v1690 = vadd.f32 0.0, %v1689
  %v1691 = vpop.f32.mrb[0].mxu0
  %1692 = vmatprep.mubr.f32.mxu0 0.0
  %1693 = vmatmul.mubr.f32.gmra.mrb[0].mxu0 %v1269
  %v1694 = vpop.f32.mrb[0].mxu0
  %v1695 = vadd.f32 0.0, %v1694
  %v1696 = vpop.f32.mrb[0].mxu0
  %1697 = vmatprep.mubr.f32.mxu0 0.0
  %1698 = vmatmul.mubr.f32.gmra.mrb[0].mxu0 %v1272
  %v1699 = vpop.f32.mrb[0].mxu0
  %v1700 = vadd.f32 0.0, %v1699
  %v1701 = vpop.f32.mrb[0].mxu0
  %1702 = vmatprep.mubr.f32.mxu0 0.0
  %1703 = vmatmul.mubr.f32.gmra.mrb[0].mxu0 %v1275
  %v1704 = vpop.f32.mrb[0].mxu0
  %v1705 = vadd.f32 0.0, %v1704
  %v1706 = vpop.f32.mrb[0].mxu0
  %1707 = vmatprep.mubr.f32.mxu0 0.0
  %1708 = vmatmul.mubr.f32.gmra.mrb[0].mxu0 %v1278
  %v1709 = vpop.f32.mrb[0].mxu0
  %v1710 = vadd.f32 0.0, %v1709
  %v1711 = vpop.f32.mrb[0].mxu0
  %1712 = vmatprep.mubr.f32.mxu0 0.0
  %1713 = vmatmul.mubr.f32.gmra.mrb[0].mxu0 %v1281
  %v1714 = vpop.f32.mrb[0].mxu0
  %v1715 = vadd.f32 0.0, %v1714
  %v1716 = vpop.f32.mrb[0].mxu0
  %1717 = vmatprep.mubr.f32.mxu0 0.0
  %1718 = vmatmul.mubr.f32.gmra.mrb[0].mxu0 %v1284
  %v1719 = vpop.f32.mrb[0].mxu0
  %v1720 = vadd.f32 0.0, %v1719
  %v1721 = vpop.f32.mrb[0].mxu0
  %1722 = vmatprep.mubr.f32.mxu0 0.0
  %1723 = vmatmul.mubr.f32.gmra.mrb[0].mxu0 %v1287
  %v1724 = vpop.f32.mrb[0].mxu0
  %v1725 = vadd.f32 0.0, %v1724
  %v1726 = vpop.f32.mrb[0].mxu0
  %1727 = vmatprep.mubr.f32.mxu0 0.0
  %1728 = vmatmul.mubr.f32.gmra.mrb[0].mxu0 %v1290
  %v1729 = vpop.f32.mrb[0].mxu0
  %v1730 = vadd.f32 0.0, %v1729
  %v1731 = vpop.f32.mrb[0].mxu0
  %1732 = vdwg.mxu0
  %v1733 = vld [vmem:[%s6] sm:$0x1]
  %v1735 = vlaneseq
  %v1736 = vshrl.u32 %v1735, 7
  %v1737 = vsub.s32 0, %v1736
  %v1738 = vrot.slane %v1733, %v1737
  %1740 = vmatprep.subr.mxu0 0.0
  %1741 = vmatpush1.msra.mxu0 %v1359
  %1742 = vmatprep.subr.mxu0 0.0
  %1743 = vmatpush1.msra.mxu0 %v1364
  %1744 = vmatprep.subr.mxu0 0.0
  %1745 = vmatpush1.msra.mxu0 %v1369
  %1746 = vmatprep.subr.mxu0 0.0
  %1747 = vmatpush1.msra.mxu0 %v1374
  %1748 = vmatprep.subr.mxu0 0.0
  %1749 = vmatpush1.msra.mxu0 %v1379
  %1750 = vmatprep.subr.mxu0 0.0
  %1751 = vmatpush1.msra.mxu0 %v1384
  %1752 = vmatprep.subr.mxu0 0.0
  %1753 = vmatpush1.msra.mxu0 %v1389
  %1754 = vmatprep.subr.mxu0 0.0
  %1755 = vmatpush1.msra.mxu0 %v1394
  %1756 = vmatprep.subr.mxu0 0.0
  %1757 = vmatpush1.msra.mxu0 %v1399
  %1758 = vmatprep.subr.mxu0 0.0
  %1759 = vmatpush1.msra.mxu0 %v1404
  %1760 = vmatprep.subr.mxu0 0.0
  %1761 = vmatpush1.msra.mxu0 %v1409
  %1762 = vmatprep.subr.mxu0 0.0
  %1763 = vmatpush1.msra.mxu0 %v1414
  %1764 = vmatprep.subr.mxu0 0.0
  %1765 = vmatpush1.msra.mxu0 %v1419
  %1766 = vmatprep.subr.mxu0 0.0
  %1767 = vmatpush1.msra.mxu0 %v1424
  %1768 = vmatprep.subr.mxu0 0.0
  %1769 = vmatpush1.msra.mxu0 %v1429
  %1770 = vmatprep.subr.mxu0 0.0
  %1771 = vmatpush1.msra.mxu0 %v1434
  %1772 = vmatprep.subr.mxu0 0.0
  %1773 = vmatpush1.msra.mxu0 %v1507
  %1774 = vmatprep.subr.mxu0 0.0
  %1775 = vmatpush1.msra.mxu0 %v1512
  %1776 = vmatprep.subr.mxu0 0.0
  %1777 = vmatpush1.msra.mxu0 %v1517
  %1778 = vmatprep.subr.mxu0 0.0
  %1779 = vmatpush1.msra.mxu0 %v1522
  %1780 = vmatprep.subr.mxu0 0.0
  %1781 = vmatpush1.msra.mxu0 %v1527
  %1782 = vmatprep.subr.mxu0 0.0
  %1783 = vmatpush1.msra.mxu0 %v1532
  %1784 = vmatprep.subr.mxu0 0.0
  %1785 = vmatpush1.msra.mxu0 %v1537
  %1786 = vmatprep.subr.mxu0 0.0
  %1787 = vmatpush1.msra.mxu0 %v1542
  %1788 = vmatprep.subr.mxu0 0.0
  %1789 = vmatpush1.msra.mxu0 %v1547
  %1790 = vmatprep.subr.mxu0 0.0
  %1791 = vmatpush1.msra.mxu0 %v1552
  %1792 = vmatprep.subr.mxu0 0.0
  %1793 = vmatpush1.msra.mxu0 %v1557
  %1794 = vmatprep.subr.mxu0 0.0
  %1795 = vmatpush1.msra.mxu0 %v1562
  %1796 = vmatprep.subr.mxu0 0.0
  %1797 = vmatpush1.msra.mxu0 %v1567
  %1798 = vmatprep.subr.mxu0 0.0
  %1799 = vmatpush1.msra.mxu0 %v1572
  %1800 = vmatprep.subr.mxu0 0.0
  %1801 = vmatpush1.msra.mxu0 %v1577
  %1802 = vmatprep.subr.mxu0 0.0
  %1803 = vmatpush1.msra.mxu0 %v1582
  %1804 = vmatprep.mubr.f32.mxu0 %v268
  %1805 = vmatmul.mubr.f32.gmra.mrb[0].mxu0 %v138
  %v1806 = vpop.f32.mrb[0].mxu0
  %v1807 = vadd.f32 %v1738, %v1806
  %v1808 = vpop.f32.mrb[0].mxu0
  %1809 = vmatprep.mubr.f32.mxu0 %v269
  %1810 = vmatmul.mubr.f32.gmra.mrb[0].mxu0 %v139
  %v1811 = vpop.f32.mrb[0].mxu0
  %v1812 = vadd.f32 %v1738, %v1811
  %v1813 = vpop.f32.mrb[0].mxu0
  %1814 = vmatprep.mubr.f32.mxu0 %v270
  %1815 = vmatmul.mubr.f32.gmra.mrb[0].mxu0 %v140
  %v1816 = vpop.f32.mrb[0].mxu0
  %v1817 = vadd.f32 %v1738, %v1816
  %v1818 = vpop.f32.mrb[0].mxu0
  %1819 = vmatprep.mubr.f32.mxu0 %v271
  %1820 = vmatmul.mubr.f32.gmra.mrb[0].mxu0 %v141
  %v1821 = vpop.f32.mrb[0].mxu0
  %v1822 = vadd.f32 %v1738, %v1821
  %v1823 = vpop.f32.mrb[0].mxu0
  %1824 = vmatprep.mubr.f32.mxu0 %v272
  %1825 = vmatmul.mubr.f32.gmra.mrb[0].mxu0 %v142
  %v1826 = vpop.f32.mrb[0].mxu0
  %v1827 = vadd.f32 %v1738, %v1826
  %v1828 = vpop.f32.mrb[0].mxu0
  %1829 = vmatprep.mubr.f32.mxu0 %v273
  %1830 = vmatmul.mubr.f32.gmra.mrb[0].mxu0 %v143
  %v1831 = vpop.f32.mrb[0].mxu0
  %v1832 = vadd.f32 %v1738, %v1831
  %v1833 = vpop.f32.mrb[0].mxu0
  %1834 = vmatprep.mubr.f32.mxu0 %v274
  %1835 = vmatmul.mubr.f32.gmra.mrb[0].mxu0 %v144
  %v1836 = vpop.f32.mrb[0].mxu0
  %v1837 = vadd.f32 %v1738, %v1836
  %v1838 = vpop.f32.mrb[0].mxu0
  %1839 = vmatprep.mubr.f32.mxu0 %v275
  %1840 = vmatmul.mubr.f32.gmra.mrb[0].mxu0 %v145
  %v1841 = vpop.f32.mrb[0].mxu0
  %v1842 = vadd.f32 %v1738, %v1841
  %v1843 = vpop.f32.mrb[0].mxu0
  %1844 = vmatprep.mubr.f32.mxu0 %v276
  %1845 = vmatmul.mubr.f32.gmra.mrb[0].mxu0 %v146
  %v1846 = vpop.f32.mrb[0].mxu0
  %v1847 = vadd.f32 %v1738, %v1846
  %v1848 = vpop.f32.mrb[0].mxu0
  %1849 = vmatprep.mubr.f32.mxu0 %v277
  %1850 = vmatmul.mubr.f32.gmra.mrb[0].mxu0 %v147
  %v1851 = vpop.f32.mrb[0].mxu0
  %v1852 = vadd.f32 %v1738, %v1851
  %v1853 = vpop.f32.mrb[0].mxu0
  %1854 = vmatprep.mubr.f32.mxu0 %v278
  %1855 = vmatmul.mubr.f32.gmra.mrb[0].mxu0 %v148
  %v1856 = vpop.f32.mrb[0].mxu0
  %v1857 = vadd.f32 %v1738, %v1856
  %v1858 = vpop.f32.mrb[0].mxu0
  %1859 = vmatprep.mubr.f32.mxu0 %v279
  %1860 = vmatmul.mubr.f32.gmra.mrb[0].mxu0 %v149
  %v1861 = vpop.f32.mrb[0].mxu0
  %v1862 = vadd.f32 %v1738, %v1861
  %v1863 = vpop.f32.mrb[0].mxu0
  %1864 = vmatprep.mubr.f32.mxu0 %v280
  %1865 = vmatmul.mubr.f32.gmra.mrb[0].mxu0 %v150
  %v1866 = vpop.f32.mrb[0].mxu0
  %v1867 = vadd.f32 %v1738, %v1866
  %v1868 = vpop.f32.mrb[0].mxu0
  %1869 = vmatprep.mubr.f32.mxu0 %v281
  %1870 = vmatmul.mubr.f32.gmra.mrb[0].mxu0 %v151
  %v1871 = vpop.f32.mrb[0].mxu0
  %v1872 = vadd.f32 %v1738, %v1871
  %v1873 = vpop.f32.mrb[0].mxu0
  %1874 = vmatprep.mubr.f32.mxu0 %v282
  %1875 = vmatmul.mubr.f32.gmra.mrb[0].mxu0 %v152
  %v1876 = vpop.f32.mrb[0].mxu0
  %v1877 = vadd.f32 %v1738, %v1876
  %v1878 = vpop.f32.mrb[0].mxu0
  %1879 = vmatprep.mubr.f32.mxu0 %v283
  %1880 = vmatmul.mubr.f32.gmra.mrb[0].mxu0 %v153
  %v1881 = vpop.f32.mrb[0].mxu0
  %v1882 = vadd.f32 %v1738, %v1881
  %v1883 = vpop.f32.mrb[0].mxu0
  %1884 = vdwg.mxu0
  %1885 = vmatprep.subr.mxu0 0.0
  %1886 = vmatpush1.msra.mxu0 %v1655
  %1887 = vmatprep.subr.mxu0 0.0
  %1888 = vmatpush1.msra.mxu0 %v1660
  %1889 = vmatprep.subr.mxu0 0.0
  %1890 = vmatpush1.msra.mxu0 %v1665
  %1891 = vmatprep.subr.mxu0 0.0
  %1892 = vmatpush1.msra.mxu0 %v1670
  %1893 = vmatprep.subr.mxu0 0.0
  %1894 = vmatpush1.msra.mxu0 %v1675
  %1895 = vmatprep.subr.mxu0 0.0
  %1896 = vmatpush1.msra.mxu0 %v1680
  %1897 = vmatprep.subr.mxu0 0.0
  %1898 = vmatpush1.msra.mxu0 %v1685
  %1899 = vmatprep.subr.mxu0 0.0
  %1900 = vmatpush1.msra.mxu0 %v1690
  %1901 = vmatprep.subr.mxu0 0.0
  %1902 = vmatpush1.msra.mxu0 %v1695
  %1903 = vmatprep.subr.mxu0 0.0
  %1904 = vmatpush1.msra.mxu0 %v1700
  %1905 = vmatprep.subr.mxu0 0.0
  %1906 = vmatpush1.msra.mxu0 %v1705
  %1907 = vmatprep.subr.mxu0 0.0
  %1908 = vmatpush1.msra.mxu0 %v1710
  %1909 = vmatprep.subr.mxu0 0.0
  %1910 = vmatpush1.msra.mxu0 %v1715
  %1911 = vmatprep.subr.mxu0 0.0
  %1912 = vmatpush1.msra.mxu0 %v1720
  %1913 = vmatprep.subr.mxu0 0.0
  %1914 = vmatpush1.msra.mxu0 %v1725
  %1915 = vmatprep.subr.mxu0 0.0
  %1916 = vmatpush1.msra.mxu0 %v1730
  %1917 = vmatprep.subr.mxu0 0.0
  %1918 = vmatpush1.msra.mxu0 0.0
  %1919 = vmatprep.subr.mxu0 0.0
  %1920 = vmatpush1.msra.mxu0 0.0
  %1921 = vmatprep.subr.mxu0 0.0
  %1922 = vmatpush1.msra.mxu0 0.0
  %1923 = vmatprep.subr.mxu0 0.0
  %1924 = vmatpush1.msra.mxu0 0.0
  %1925 = vmatprep.subr.mxu0 0.0
  %1926 = vmatpush1.msra.mxu0 0.0
  %1927 = vmatprep.subr.mxu0 0.0
  %1928 = vmatpush1.msra.mxu0 0.0
  %1929 = vmatprep.subr.mxu0 0.0
  %1930 = vmatpush1.msra.mxu0 0.0
  %1931 = vmatprep.subr.mxu0 0.0
  %1932 = vmatpush1.msra.mxu0 0.0
  %1933 = vmatprep.subr.mxu0 0.0
  %1934 = vmatpush1.msra.mxu0 0.0
  %1935 = vmatprep.subr.mxu0 0.0
  %1936 = vmatpush1.msra.mxu0 0.0
  %1937 = vmatprep.subr.mxu0 0.0
  %1938 = vmatpush1.msra.mxu0 0.0
  %1939 = vmatprep.subr.mxu0 0.0
  %1940 = vmatpush1.msra.mxu0 0.0
  %1941 = vmatprep.subr.mxu0 0.0
  %1942 = vmatpush1.msra.mxu0 0.0
  %1943 = vmatprep.subr.mxu0 0.0
  %1944 = vmatpush1.msra.mxu0 0.0
  %1945 = vmatprep.subr.mxu0 0.0
  %1946 = vmatpush1.msra.mxu0 0.0
  %1947 = vmatprep.subr.mxu0 0.0
  %1948 = vmatpush1.msra.mxu0 0.0
  %1949 = vmatprep.mubr.f32.mxu0 0.0
  %1950 = vmatmul.mubr.f32.gmra.mrb[0].mxu0 %v398
  %v1951 = vpop.f32.mrb[0].mxu0
  %v1952 = vadd.f32 %v1807, %v1951
  %v1953 = vpop.f32.mrb[0].mxu0
  %1954 = vmatprep.mubr.f32.mxu0 0.0
  %1955 = vmatmul.mubr.f32.gmra.mrb[0].mxu0 %v399
  %v1956 = vpop.f32.mrb[0].mxu0
  %v1957 = vadd.f32 %v1812, %v1956
  %v1958 = vpop.f32.mrb[0].mxu0
  %1959 = vmatprep.mubr.f32.mxu0 0.0
  %1960 = vmatmul.mubr.f32.gmra.mrb[0].mxu0 %v400
  %v1961 = vpop.f32.mrb[0].mxu0
  %v1962 = vadd.f32 %v1817, %v1961
  %v1963 = vpop.f32.mrb[0].mxu0
  %1964 = vmatprep.mubr.f32.mxu0 0.0
  %1965 = vmatmul.mubr.f32.gmra.mrb[0].mxu0 %v401
  %v1966 = vpop.f32.mrb[0].mxu0
  %v1967 = vadd.f32 %v1822, %v1966
  %v1968 = vpop.f32.mrb[0].mxu0
  %1969 = vmatprep.mubr.f32.mxu0 0.0
  %1970 = vmatmul.mubr.f32.gmra.mrb[0].mxu0 %v402
  %v1971 = vpop.f32.mrb[0].mxu0
  %v1972 = vadd.f32 %v1827, %v1971
  %v1973 = vpop.f32.mrb[0].mxu0
  %1974 = vmatprep.mubr.f32.mxu0 0.0
  %1975 = vmatmul.mubr.f32.gmra.mrb[0].mxu0 %v403
  %v1976 = vpop.f32.mrb[0].mxu0
  %v1977 = vadd.f32 %v1832, %v1976
  %v1978 = vpop.f32.mrb[0].mxu0
  %1979 = vmatprep.mubr.f32.mxu0 0.0
  %1980 = vmatmul.mubr.f32.gmra.mrb[0].mxu0 %v404
  %v1981 = vpop.f32.mrb[0].mxu0
  %v1982 = vadd.f32 %v1837, %v1981
  %v1983 = vpop.f32.mrb[0].mxu0
  %1984 = vmatprep.mubr.f32.mxu0 0.0
  %1985 = vmatmul.mubr.f32.gmra.mrb[0].mxu0 %v405
  %v1986 = vpop.f32.mrb[0].mxu0
  %v1987 = vadd.f32 %v1842, %v1986
  %v1988 = vpop.f32.mrb[0].mxu0
  %1989 = vmatprep.mubr.f32.mxu0 0.0
  %1990 = vmatmul.mubr.f32.gmra.mrb[0].mxu0 %v406
  %v1991 = vpop.f32.mrb[0].mxu0
  %v1992 = vadd.f32 %v1847, %v1991
  %v1993 = vpop.f32.mrb[0].mxu0
  %1994 = vmatprep.mubr.f32.mxu0 0.0
  %1995 = vmatmul.mubr.f32.gmra.mrb[0].mxu0 %v407
  %v1996 = vpop.f32.mrb[0].mxu0
  %v1997 = vadd.f32 %v1852, %v1996
  %v1998 = vpop.f32.mrb[0].mxu0
  %1999 = vmatprep.mubr.f32.mxu0 0.0
  %2000 = vmatmul.mubr.f32.gmra.mrb[0].mxu0 %v408
  %v2001 = vpop.f32.mrb[0].mxu0
  %v2002 = vadd.f32 %v1857, %v2001
  %v2003 = vpop.f32.mrb[0].mxu0
  %2004 = vmatprep.mubr.f32.mxu0 0.0
  %2005 = vmatmul.mubr.f32.gmra.mrb[0].mxu0 %v409
  %v2006 = vpop.f32.mrb[0].mxu0
  %v2007 = vadd.f32 %v1862, %v2006
  %v2008 = vpop.f32.mrb[0].mxu0
  %2009 = vmatprep.mubr.f32.mxu0 0.0
  %2010 = vmatmul.mubr.f32.gmra.mrb[0].mxu0 %v410
  %v2011 = vpop.f32.mrb[0].mxu0
  %v2012 = vadd.f32 %v1867, %v2011
  %v2013 = vpop.f32.mrb[0].mxu0
  %2014 = vmatprep.mubr.f32.mxu0 0.0
  %2015 = vmatmul.mubr.f32.gmra.mrb[0].mxu0 %v411
  %v2016 = vpop.f32.mrb[0].mxu0
  %v2017 = vadd.f32 %v1872, %v2016
  %v2018 = vpop.f32.mrb[0].mxu0
  %2019 = vmatprep.mubr.f32.mxu0 0.0
  %2020 = vmatmul.mubr.f32.gmra.mrb[0].mxu0 %v412
  %v2021 = vpop.f32.mrb[0].mxu0
  %v2022 = vadd.f32 %v1877, %v2021
  %v2023 = vpop.f32.mrb[0].mxu0
  %2024 = vmatprep.mubr.f32.mxu0 0.0
  %2025 = vmatmul.mubr.f32.gmra.mrb[0].mxu0 %v413
  %v2026 = vpop.f32.mrb[0].mxu0
  %v2027 = vadd.f32 %v1882, %v2026
  %v2028 = vpop.f32.mrb[0].mxu0
  %2029 = vdwg.mxu0
  %vm2030 = vcmask 15360
  %2031 = vst.msk [vmem:[%s7] sm:$0xff] %vm2030, %v1952
  %2032 = vst.msk [vmem:[%s7 + $0x8] sm:$0xff] %vm2030, %v1957
  %2033 = vst.msk [vmem:[%s7 + $0x10] sm:$0xff] %vm2030, %v1962
  %2034 = vst.msk [vmem:[%s7 + $0x18] sm:$0xff] %vm2030, %v1967
  %2035 = vst.msk [vmem:[%s7 + $0x20] sm:$0xff] %vm2030, %v1972
  %2036 = vst.msk [vmem:[%s7 + $0x28] sm:$0xff] %vm2030, %v1977
  %2037 = vst.msk [vmem:[%s7 + $0x30] sm:$0xff] %vm2030, %v1982
  %2038 = vst.msk [vmem:[%s7 + $0x38] sm:$0xff] %vm2030, %v1987
  %2039 = vst.msk [vmem:[%s7 + $0x40] sm:$0xff] %vm2030, %v1992
  %2040 = vst.msk [vmem:[%s7 + $0x48] sm:$0xff] %vm2030, %v1997
  %2041 = vst.msk [vmem:[%s7 + $0x50] sm:$0xff] %vm2030, %v2002
  %2042 = vst.msk [vmem:[%s7 + $0x58] sm:$0xff] %vm2030, %v2007
  %2043 = vst.msk [vmem:[%s7 + $0x60] sm:$0xff] %vm2030, %v2012
  %2044 = vst.msk [vmem:[%s7 + $0x68] sm:$0xff] %vm2030, %v2017
  %2045 = vst.msk [vmem:[%s7 + $0x70] sm:$0xff] %vm2030, %v2022
  %2046 = vst.msk [vmem:[%s7 + $0x78] sm:$0xff] %vm2030, %v2027
  // Predicated region
  $region30: #{tpu_custom_call.1} parent=0 // pred_check
    _
  $region31: #{tpu_custom_call.1} parent=0 // pred_check_branch
    %2048 = sbr.rel (0) target = $region33
  $region32: #{tpu_custom_call.1} parent=0 // pred_region
    _
  $region33: #{tpu_custom_call.1} parent=0 // pred_fallthru
    _
  // Predicated region
  $region34: #{tpu_custom_call.1} parent=0 // pred_check
    _
  $region35: #{tpu_custom_call.1} parent=0 // pred_check_branch
    %2050 = sbr.rel (0) target = $region37
  $region36: #{tpu_custom_call.1} parent=0 // pred_region
    _
  $region37: #{tpu_custom_call.1} parent=0 // pred_fallthru
    _

</llo_original>
